<compile_context>
chip_gen: v7x
topology: tpu7x:2x2x1
jax: 0.10.0
libtpu: 0.0.40
codegen_flags: <defaults>
</compile_context>

<pallas_src>
import math
import functools

import jax
import jax.numpy as jnp
from jax.experimental import pallas as pl
from jax.experimental.pallas import tpu as pltpu


_KTAP = 16  # 3x3 = 9 conv1 taps, zero-padded to 16 for a clean MXU K dim


def _round_up(x, m):
    return ((x + m - 1) // m) * m


def _vmem_limit_bytes():
    # Per-generation scoped-VMEM limit (review item): half the physical VMEM is
    # always safe (v5e/v6e: 64 MiB of 128, v7x: 32 MiB of 64) and comfortably
    # covers this kernel's ~15-20 MiB working set at real model shapes.
    try:
        cap = int(pltpu.get_tpu_info().vmem_capacity_bytes)
        return min(cap // 2, 64 * 1024 * 1024)
    except Exception:
        return 32 * 1024 * 1024


# ----------------------------- Pallas kernel -------------------------------

def _fused_kernel(p_ref, w1_ref, b1_ref, w2_ref, b2_ref, w3_ref, b3_ref, pe_ref,
                  o_ref, shift_ref, acc_ref, *, F1, F2, tT, Cp, xscale):
    """Fused conv1(3x3,s2)+ReLU -> conv2(3x3,s1)+ReLU -> flatten -> Linear -> PE.

    p_ref    : (F1, tT+8, 16)  bf16 im2col'd stride-2 patches for this time tile
                               (incl. 2-row halo; taps zero-padded 9 -> 16)
    w1_ref   : (16, Cp) bf16           b1_ref: (1, Cp) f32
    w2_ref   : (9, Cp, Cp) bf16  (tap=kt*3+kf, cin, cout)   b2_ref: (1, Cp) f32
    w3_ref   : (F2, Cp, Cp) bf16 (linear weight regrouped per output frequency)
    b3_ref   : (1, Cp) f32
    pe_ref   : (tT, Cp) f32  positional encoding rows for this time tile
    o_ref    : (tT, Cp) f32
    shift_ref: VMEM (3*F1, tT, Cp) bf16 -- h1 window pre-shifted by kt = 0,1,2
    acc_ref  : VMEM (tT, Cp) f32
    """
    f32 = jnp.float32

    # ---- conv1 prologue: build the kt-shifted h1 slabs in VMEM ----
    w1 = w1_ref[...]                       # (16, Cp) bf16, hoisted
    b1 = b1_ref[...]                       # (1, Cp)  f32,  hoisted

    def conv1_body(f, carry):
        patch = p_ref[f]                                          # (tT+8, 16)
        h = jnp.dot(patch, w1, preferred_element_type=f32)        # (tT+8, Cp)
        h = jnp.maximum(h + b1, 0.0).astype(jnp.bfloat16)
        # pay the temporal shift exactly once, at store time
        shift_ref[f] = h[0:tT]
        shift_ref[F1 + f] = h[1:tT + 1]
        shift_ref[2 * F1 + f] = h[2:tT + 2]
        return carry

    jax.lax.fori_loop(0, F1, conv1_body, 0)

    # ---- conv2 + ReLU + (flatten + Linear) accumulated over output frequency ----
    acc_ref[...] = jnp.zeros_like(acc_ref)
    b2 = jnp.broadcast_to(b2_ref[...], (tT, Cp))   # hoisted broadcast (review item)

    def conv2_body(f, carry):
        c2 = jnp.zeros((tT, Cp), f32)
        for kt in range(3):                          # 3x3 taps stay unrolled
            for kf in range(3):
                c2 = c2 + jnp.dot(shift_ref[kt * F1 + f + kf],
                                  w2_ref[kt * 3 + kf],
                                  preferred_element_type=f32)
        c2 = jnp.maximum(c2 + b2, 0.0).astype(jnp.bfloat16)
        # fold the torch (c,f)-major flatten + Linear: contract with this
        # frequency's w3 block immediately (h2 never materializes in HBM)
        acc_ref[...] += jnp.dot(c2, w3_ref[f], preferred_element_type=f32)
        return carry

    jax.lax.fori_loop(0, F2, conv2_body, 0)

    y = (acc_ref[...] + b3_ref[...]) * xscale + pe_ref[...]
    o_ref[...] = y.astype(o_ref.dtype)


# ------------------------------ JAX glue -----------------------------------

def sinusoidal_pe(length, d_model):
    pos = jnp.arange(length, dtype=jnp.float32)[:, None]
    div = jnp.exp(jnp.arange(0, d_model, 2, dtype=jnp.float32)
                  * -(math.log(10000.0) / d_model))
    pe = jnp.zeros((length, d_model), jnp.float32)
    pe = pe.at[:, 0::2].set(jnp.sin(pos * div))
    pe = pe.at[:, 1::2].set(jnp.cos(pos * div)[:, : d_model // 2])
    return pe


def _im2col_stride2(x, t_out, f_out):
    # x: (B, T, F) single channel -> (B, t_out, f_out, 9), patch index = kt*3+kf
    cols = []
    for kt in range(3):
        for kf in range(3):
            cols.append(x[:, kt:kt + 2 * t_out:2, kf:kf + 2 * f_out:2])
    return jnp.stack(cols, axis=-1)


def init_params(key, idim, odim):
    fdim = odim * ((idim - 1) // 2 - 2)
    k1, k2, k3, k4, k5, k6 = jax.random.split(key, 6)
    return {
        "w1": 0.1 * jax.random.normal(k1, (odim, 1, 3, 3), jnp.float32),
        "b1": 0.1 * jax.random.normal(k2, (odim,), jnp.float32),
        "w2": 0.1 * jax.random.normal(k3, (odim, odim, 3, 3), jnp.float32),
        "b2": 0.1 * jax.random.normal(k4, (odim,), jnp.float32),
        "w3": 0.1 * jax.random.normal(k5, (odim, fdim), jnp.float32),
        "b3": 0.1 * jax.random.normal(k6, (odim,), jnp.float32),
    }


def conv2d_subsampling2_forward(x, x_mask, params, odim, *, t_tile=128):
    """x: (B, T, idim) float32, x_mask: (B, 1, T) bool or None."""
    B, T, idim = x.shape
    T1 = (T - 3) // 2 + 1
    F1 = (idim - 3) // 2 + 1
    T2, F2 = T1 - 2, F1 - 2

    Cp = _round_up(odim, 128)              # lane-dense channel dim
    tT = min(t_tile, _round_up(T2, 8))     # time tile (multiple of 8)
    nT = -(-T2 // tT)
    T2p = nT * tT                          # padded output length
    tTw = tT + 8                           # per-tile conv1 rows (2-row halo + pad)
    T1pp = T2p + 8                         # total conv1 rows ever touched

    bf16, f32 = jnp.bfloat16, jnp.float32

    # ---- parameter prep (one-off layout plumbing; MXU operands cast to bf16) ----
    w1p = jnp.zeros((_KTAP, Cp), f32).at[:9, :odim].set(
        params["w1"].reshape(odim, 9).T).astype(bf16)
    b1p = jnp.zeros((1, Cp), f32).at[0, :odim].set(params["b1"])
    # (out,in,kh,kw) -> (kt*3+kf, cin, cout)
    w2p = jnp.zeros((9, Cp, Cp), f32).at[:, :odim, :odim].set(
        jnp.transpose(params["w2"], (2, 3, 1, 0)).reshape(9, odim, odim)).astype(bf16)
    b2p = jnp.zeros((1, Cp), f32).at[0, :odim].set(params["b2"])
    # torch flatten is channel-major (c*F2 + f); regroup rows per frequency so the
    # in-kernel f-major contraction needs no transpose of h2.
    w3p = jnp.zeros((F2, Cp, Cp), f32).at[:, :odim, :odim].set(
        jnp.transpose(params["w3"].T.reshape(odim, F2, odim), (1, 0, 2))).astype(bf16)
    b3p = jnp.zeros((1, Cp), f32).at[0, :odim].set(params["b3"])
    pe_p = jnp.zeros((T2p, Cp), f32).at[:, :odim].set(sinusoidal_pe(T2p, odim))

    # ---- conv1 input: im2col, blocked per time tile with a duplicated halo so
    #      kernel blocks never overlap (no Element window / manual DMA needed) ----
    xp = jnp.pad(x, ((0, 0), (0, 2 * T1pp + 1 - T), (0, 0)))
    p1 = _im2col_stride2(xp, T1pp, F1)                               # (B,T1pp,F1,9)
    p1 = jnp.pad(p1, ((0, 0), (0, 0), (0, 0), (0, _KTAP - 9))).astype(bf16)
    tidx = (jnp.arange(nT) * tT)[:, None] + jnp.arange(tTw)[None, :]  # (nT, tTw)
    p1b = p1[:, tidx]                                                # (B,nT,tTw,F1,16)
    p1b = jnp.transpose(p1b, (0, 1, 3, 2, 4)).reshape(B * nT, F1, tTw, _KTAP)

    xscale = float(math.sqrt(odim))
    const = dict(pipeline_mode=pl.Buffered(1))  # single-buffer grid-invariant operands

    y_pad = pl.pallas_call(
        functools.partial(_fused_kernel, F1=F1, F2=F2, tT=tT, Cp=Cp, xscale=xscale),
        out_shape=jax.ShapeDtypeStruct((B, T2p, Cp), f32),
        grid=(B, nT),
        in_specs=[
            pl.BlockSpec((None, F1, tTw, _KTAP),
                         lambda b, t: (b * nT + t, 0, 0, 0)),          # patches
            pl.BlockSpec((_KTAP, Cp), lambda b, t: (0, 0), **const),   # w1
            pl.BlockSpec((1, Cp), lambda b, t: (0, 0), **const),       # b1
            pl.BlockSpec((9, Cp, Cp), lambda b, t: (0, 0, 0), **const),  # w2
            pl.BlockSpec((1, Cp), lambda b, t: (0, 0), **const),       # b2
            pl.BlockSpec((F2, Cp, Cp), lambda b, t: (0, 0, 0), **const),  # w3
            pl.BlockSpec((1, Cp), lambda b, t: (0, 0), **const),       # b3
            pl.BlockSpec((tT, Cp), lambda b, t: (t, 0)),               # PE rows
        ],
        out_specs=pl.BlockSpec((None, tT, Cp), lambda b, t: (b, t, 0)),
        scratch_shapes=[
            pltpu.VMEM((3 * F1, tT, Cp), bf16),   # kt-shifted h1 window
            pltpu.VMEM((tT, Cp), f32),            # linear accumulator
        ],
        compiler_params=pltpu.CompilerParams(
            dimension_semantics=("parallel", "parallel"),
            vmem_limit_bytes=_vmem_limit_bytes()),
    )(p1b, w1p, b1p, w2p, b2p, w3p, b3p, pe_p)

    y = y_pad[:, :T2, :odim]
    if x_mask is None:
        return y, None
    return y, x_mask[:, :, :-2:2][:, :, :-2:1]


# --------------------------- pure-JAX reference ----------------------------

def _ref_forward(x, x_mask, params, odim):
    # Emulates the kernel's bf16 operand rounding so the check is tight.
    HI = jax.lax.Precision.HIGHEST
    bf = lambda a: a.astype(jnp.bfloat16).astype(jnp.float32)
    h = bf(x)[:, None, :, :]
    h = jax.lax.conv_general_dilated(h, bf(params["w1"]), (2, 2), "VALID",
                                     dimension_numbers=("NCHW", "OIHW", "NCHW"),
                                     precision=HI)
    h = bf(jax.nn.relu(h + params["b1"][None, :, None, None]))
    h = jax.lax.conv_general_dilated(h, bf(params["w2"]), (1, 1), "VALID",
                                     dimension_numbers=("NCHW", "OIHW", "NCHW"),
                                     precision=HI)
    h = bf(jax.nn.relu(h + params["b2"][None, :, None, None]))
    b, c, t, f = h.shape
    h = jnp.transpose(h, (0, 2, 1, 3)).reshape(b, t, c * f)
    y = jnp.dot(h, bf(params["w3"]).T, precision=HI) + params["b3"]
    y = y * math.sqrt(odim) + sinusoidal_pe(t, odim)[None]
    m = None if x_mask is None else x_mask[:, :, :-2:2][:, :, :-2:1]
    return y, m


# --------------------------------- main ------------------------------------

if __name__ == "__main__":
    def run_case(B, T, idim, odim, t_tile):
        key = jax.random.PRNGKey(0)
        kx, kp = jax.random.split(key)
        x = jax.random.normal(kx, (B, T, idim), jnp.float32)
        x_mask = jnp.ones((B, 1, T), dtype=bool)
        params = init_params(kp, idim, odim)

        fwd = jax.jit(functools.partial(conv2d_subsampling2_forward,
                                        odim=odim, t_tile=t_tile))
        y, m = fwd(x, x_mask, params)
        y = jax.block_until_ready(y)
        m = jax.block_until_ready(m)

        y_ref, m_ref = _ref_forward(x, x_mask, params, odim)
        T2 = (T - 3) // 2 + 1 - 2
        assert y.shape == (B, T2, odim), y.shape
        assert m.shape == m_ref.shape and bool(jnp.all(m == m_ref))
        err = float(jnp.max(jnp.abs(y - y_ref)))
        assert bool(jnp.allclose(y, y_ref, rtol=1e-2, atol=1e-2)), err

    # single time tile
    run_case(B=2, T=16, idim=16, odim=32, t_tile=128)
    # multiple time tiles (exercises the halo'd block layout / pipeline path)
    run_case(B=2, T=75, idim=16, odim=32, t_tile=16)

    print("KERNEL_OK")
</pallas_src>

<mosaic_0001>
module attributes {stable_mosaic.version = 11 : i64} {
  func.func @_fused_kernel(%arg0: i32, %arg1: i32, %arg2: memref<1x7x16x16xbf16, #tpu.memory_space<vmem>>, %arg3: memref<16x128xbf16, #tpu.memory_space<vmem>>, %arg4: memref<1x128xf32, #tpu.memory_space<vmem>>, %arg5: memref<9x128x128xbf16, #tpu.memory_space<vmem>>, %arg6: memref<1x128xf32, #tpu.memory_space<vmem>>, %arg7: memref<5x128x128xbf16, #tpu.memory_space<vmem>>, %arg8: memref<1x128xf32, #tpu.memory_space<vmem>>, %arg9: memref<8x128xf32, #tpu.memory_space<vmem>>, %arg10: memref<1x8x128xf32, #tpu.memory_space<vmem>>, %arg11: memref<21x8x128xbf16, #tpu.memory_space<vmem>>, %arg12: memref<8x128xf32, #tpu.memory_space<vmem>>) attributes {dimension_semantics = [#tpu.dimension_semantics<parallel>, #tpu.dimension_semantics<parallel>], iteration_bounds = array<i64: 2, 1>, scalar_prefetch = 0 : i64, scratch_operands = 2 : i64, tpu.core_type = #tpu.core_type<tc>, window_params = [{transform_indices = @transform_0, window_bounds = array<i64: 1, 7, 16, 16>}, {pipeline_mode = #tpu.pipeline_mode<synchronous>, transform_indices = @transform_1, window_bounds = array<i64: 16, 128>}, {pipeline_mode = #tpu.pipeline_mode<synchronous>, transform_indices = @transform_2, window_bounds = array<i64: 1, 128>}, {pipeline_mode = #tpu.pipeline_mode<synchronous>, transform_indices = @transform_3, window_bounds = array<i64: 9, 128, 128>}, {pipeline_mode = #tpu.pipeline_mode<synchronous>, transform_indices = @transform_4, window_bounds = array<i64: 1, 128>}, {pipeline_mode = #tpu.pipeline_mode<synchronous>, transform_indices = @transform_5, window_bounds = array<i64: 5, 128, 128>}, {pipeline_mode = #tpu.pipeline_mode<synchronous>, transform_indices = @transform_6, window_bounds = array<i64: 1, 128>}, {transform_indices = @transform_7, window_bounds = array<i64: 8, 128>}, {transform_indices = @transform_8, window_bounds = array<i64: 1, 8, 128>}]} {
    %c0 = arith.constant 0 : index
    %c0_0 = arith.constant 0 : index
    %0 = vector.load %arg3[%c0, %c0_0] : memref<16x128xbf16, #tpu.memory_space<vmem>>, vector<16x128xbf16>
    %c0_1 = arith.constant 0 : index
    %c0_2 = arith.constant 0 : index
    %1 = vector.load %arg4[%c0_1, %c0_2] : memref<1x128xf32, #tpu.memory_space<vmem>>, vector<1x128xf32>
    %c0_i32 = arith.constant 0 : i32
    %c7_i32 = arith.constant 7 : i32
    %2 = arith.addi %c0_i32, %c7_i32 : i32
    %c1_i32 = arith.constant 1 : i32
    scf.for %arg13 = %c0_i32 to %2 step %c1_i32  : i32 {
      %c0_21 = arith.constant 0 : index
      %20 = arith.index_cast %arg13 : i32 to index
      %c0_22 = arith.constant 0 : index
      %c0_23 = arith.constant 0 : index
      %21 = vector.load %arg2[%c0_21, %20, %c0_22, %c0_23] : memref<1x7x16x16xbf16, #tpu.memory_space<vmem>>, vector<1x1x16x16xbf16>
      %22 = vector.shape_cast %21 : vector<1x1x16x16xbf16> to vector<16x16xbf16>
      %cst_24 = arith.constant dense<0.000000e+00> : vector<16x128xf32>
      %23 = tpu.matmul %22, %0, %cst_24 {dimension_numbers = #tpu.dot_dimension_numbers<[1], [0], [0], [1], [0, 0, 1, 1], [], []>} : vector<16x16xbf16>, vector<16x128xbf16>, vector<16x128xf32> -> vector<16x128xf32>
      %24 = vector.broadcast %1 : vector<1x128xf32> to vector<16x128xf32>
      %25 = arith.addf %23, %24 : vector<16x128xf32>
      %cst_25 = arith.constant 0.000000e+00 : f32
      %26 = vector.broadcast %cst_25 : f32 to vector<16x128xf32>
      %27 = arith.maximumf %25, %26 : vector<16x128xf32>
      %28 = arith.truncf %27 : vector<16x128xf32> to vector<16x128xbf16>
      %29 = vector.extract_strided_slice %28 {offsets = [0, 0], sizes = [8, 128], strides = [1, 1]} : vector<16x128xbf16> to vector<8x128xbf16>
      %30 = arith.index_cast %arg13 : i32 to index
      %c0_26 = arith.constant 0 : index
      %c0_27 = arith.constant 0 : index
      %31 = vector.load %arg11[%30, %c0_26, %c0_27] : memref<21x8x128xbf16, #tpu.memory_space<vmem>>, vector<1x8x128xbf16>
      %32 = vector.shape_cast %31 : vector<1x8x128xbf16> to vector<8x128xbf16>
      %33 = vector.shape_cast %29 : vector<8x128xbf16> to vector<1x8x128xbf16>
      tpu.vector_store %arg11[%30, %c0_26, %c0_27], %33 {strides = array<i32>} : memref<21x8x128xbf16, #tpu.memory_space<vmem>>, vector<1x8x128xbf16>,
      %34 = vector.extract_strided_slice %28 {offsets = [1, 0], sizes = [8, 128], strides = [1, 1]} : vector<16x128xbf16> to vector<8x128xbf16>
      %c7_i32_28 = arith.constant 7 : i32
      %35 = arith.addi %c7_i32_28, %arg13 : i32
      %36 = arith.index_cast %35 : i32 to index
      %c0_29 = arith.constant 0 : index
      %c0_30 = arith.constant 0 : index
      %37 = vector.load %arg11[%36, %c0_29, %c0_30] : memref<21x8x128xbf16, #tpu.memory_space<vmem>>, vector<1x8x128xbf16>
      %38 = vector.shape_cast %37 : vector<1x8x128xbf16> to vector<8x128xbf16>
      %39 = vector.shape_cast %34 : vector<8x128xbf16> to vector<1x8x128xbf16>
      tpu.vector_store %arg11[%36, %c0_29, %c0_30], %39 {strides = array<i32>} : memref<21x8x128xbf16, #tpu.memory_space<vmem>>, vector<1x8x128xbf16>,
      %40 = vector.extract_strided_slice %28 {offsets = [2, 0], sizes = [8, 128], strides = [1, 1]} : vector<16x128xbf16> to vector<8x128xbf16>
      %c14_i32 = arith.constant 14 : i32
      %41 = arith.addi %c14_i32, %arg13 : i32
      %42 = arith.index_cast %41 : i32 to index
      %c0_31 = arith.constant 0 : index
      %c0_32 = arith.constant 0 : index
      %43 = vector.load %arg11[%42, %c0_31, %c0_32] : memref<21x8x128xbf16, #tpu.memory_space<vmem>>, vector<1x8x128xbf16>
      %44 = vector.shape_cast %43 : vector<1x8x128xbf16> to vector<8x128xbf16>
      %45 = vector.shape_cast %40 : vector<8x128xbf16> to vector<1x8x128xbf16>
      tpu.vector_store %arg11[%42, %c0_31, %c0_32], %45 {strides = array<i32>} : memref<21x8x128xbf16, #tpu.memory_space<vmem>>, vector<1x8x128xbf16>,
    }
    %c7_i32_3 = arith.constant 7 : i32
    %cst = arith.constant 0.000000e+00 : f32
    %3 = vector.broadcast %cst : f32 to vector<8x128xf32>
    %c0_4 = arith.constant 0 : index
    %c0_5 = arith.constant 0 : index
    %4 = vector.load %arg12[%c0_4, %c0_5] : memref<8x128xf32, #tpu.memory_space<vmem>>, vector<8x128xf32>
    tpu.vector_store %arg12[%c0_4, %c0_5], %3 {strides = array<i32>} : memref<8x128xf32, #tpu.memory_space<vmem>>, vector<8x128xf32>,
    %c0_6 = arith.constant 0 : index
    %c0_7 = arith.constant 0 : index
    %5 = vector.load %arg6[%c0_6, %c0_7] : memref<1x128xf32, #tpu.memory_space<vmem>>, vector<1x128xf32>
    %6 = vector.shape_cast %5 : vector<1x128xf32> to vector<1x128xf32>
    %7 = vector.broadcast %6 : vector<1x128xf32> to vector<8x128xf32>
    %c0_i32_8 = arith.constant 0 : i32
    %c5_i32 = arith.constant 5 : i32
    %8 = arith.addi %c0_i32_8, %c5_i32 : i32
    %c1_i32_9 = arith.constant 1 : i32
    scf.for %arg13 = %c0_i32_8 to %8 step %c1_i32_9  : i32 {
      %cst_21 = arith.constant 0.000000e+00 : f32
      %20 = vector.broadcast %cst_21 : f32 to vector<8x128xf32>
      %c0_i32_22 = arith.constant 0 : i32
      %21 = arith.addi %c0_i32_22, %arg13 : i32
      %c0_i32_23 = arith.constant 0 : i32
      %22 = arith.addi %21, %c0_i32_23 : i32
      %23 = arith.index_cast %22 : i32 to index
      %c0_24 = arith.constant 0 : index
      %c0_25 = arith.constant 0 : index
      %24 = vector.load %arg11[%23, %c0_24, %c0_25] : memref<21x8x128xbf16, #tpu.memory_space<vmem>>, vector<1x8x128xbf16>
      %25 = vector.shape_cast %24 : vector<1x8x128xbf16> to vector<8x128xbf16>
      %c0_26 = arith.constant 0 : index
      %c0_27 = arith.constant 0 : index
      %c0_28 = arith.constant 0 : index
      %26 = vector.load %arg5[%c0_26, %c0_27, %c0_28] : memref<9x128x128xbf16, #tpu.memory_space<vmem>>, vector<1x128x128xbf16>
      %27 = vector.shape_cast %26 : vector<1x128x128xbf16> to vector<128x128xbf16>
      %cst_29 = arith.constant dense<0.000000e+00> : vector<8x128xf32>
      %28 = tpu.matmul %25, %27, %cst_29 {dimension_numbers = #tpu.dot_dimension_numbers<[1], [0], [0], [1], [0, 0, 1, 1], [], []>} : vector<8x128xbf16>, vector<128x128xbf16>, vector<8x128xf32> -> vector<8x128xf32>
      %29 = arith.addf %20, %28 : vector<8x128xf32>
      %c0_i32_30 = arith.constant 0 : i32
      %30 = arith.addi %c0_i32_30, %arg13 : i32
      %c1_i32_31 = arith.constant 1 : i32
      %31 = arith.addi %30, %c1_i32_31 : i32
      %32 = arith.index_cast %31 : i32 to index
      %c0_32 = arith.constant 0 : index
      %c0_33 = arith.constant 0 : index
      %33 = vector.load %arg11[%32, %c0_32, %c0_33] : memref<21x8x128xbf16, #tpu.memory_space<vmem>>, vector<1x8x128xbf16>
      %34 = vector.shape_cast %33 : vector<1x8x128xbf16> to vector<8x128xbf16>
      %c1 = arith.constant 1 : index
      %c0_34 = arith.constant 0 : index
      %c0_35 = arith.constant 0 : index
      %35 = vector.load %arg5[%c1, %c0_34, %c0_35] : memref<9x128x128xbf16, #tpu.memory_space<vmem>>, vector<1x128x128xbf16>
      %36 = vector.shape_cast %35 : vector<1x128x128xbf16> to vector<128x128xbf16>
      %cst_36 = arith.constant dense<0.000000e+00> : vector<8x128xf32>
      %37 = tpu.matmul %34, %36, %cst_36 {dimension_numbers = #tpu.dot_dimension_numbers<[1], [0], [0], [1], [0, 0, 1, 1], [], []>} : vector<8x128xbf16>, vector<128x128xbf16>, vector<8x128xf32> -> vector<8x128xf32>
      %38 = arith.addf %29, %37 : vector<8x128xf32>
      %c0_i32_37 = arith.constant 0 : i32
      %39 = arith.addi %c0_i32_37, %arg13 : i32
      %c2_i32 = arith.constant 2 : i32
      %40 = arith.addi %39, %c2_i32 : i32
      %41 = arith.index_cast %40 : i32 to index
      %c0_38 = arith.constant 0 : index
      %c0_39 = arith.constant 0 : index
      %42 = vector.load %arg11[%41, %c0_38, %c0_39] : memref<21x8x128xbf16, #tpu.memory_space<vmem>>, vector<1x8x128xbf16>
      %43 = vector.shape_cast %42 : vector<1x8x128xbf16> to vector<8x128xbf16>
      %c2 = arith.constant 2 : index
      %c0_40 = arith.constant 0 : index
      %c0_41 = arith.constant 0 : index
      %44 = vector.load %arg5[%c2, %c0_40, %c0_41] : memref<9x128x128xbf16, #tpu.memory_space<vmem>>, vector<1x128x128xbf16>
      %45 = vector.shape_cast %44 : vector<1x128x128xbf16> to vector<128x128xbf16>
      %cst_42 = arith.constant dense<0.000000e+00> : vector<8x128xf32>
      %46 = tpu.matmul %43, %45, %cst_42 {dimension_numbers = #tpu.dot_dimension_numbers<[1], [0], [0], [1], [0, 0, 1, 1], [], []>} : vector<8x128xbf16>, vector<128x128xbf16>, vector<8x128xf32> -> vector<8x128xf32>
      %47 = arith.addf %38, %46 : vector<8x128xf32>
      %c7_i32_43 = arith.constant 7 : i32
      %48 = arith.addi %c7_i32_43, %arg13 : i32
      %c0_i32_44 = arith.constant 0 : i32
      %49 = arith.addi %48, %c0_i32_44 : i32
      %50 = arith.index_cast %49 : i32 to index
      %c0_45 = arith.constant 0 : index
      %c0_46 = arith.constant 0 : index
      %51 = vector.load %arg11[%50, %c0_45, %c0_46] : memref<21x8x128xbf16, #tpu.memory_space<vmem>>, vector<1x8x128xbf16>
      %52 = vector.shape_cast %51 : vector<1x8x128xbf16> to vector<8x128xbf16>
      %c3 = arith.constant 3 : index
      %c0_47 = arith.constant 0 : index
      %c0_48 = arith.constant 0 : index
      %53 = vector.load %arg5[%c3, %c0_47, %c0_48] : memref<9x128x128xbf16, #tpu.memory_space<vmem>>, vector<1x128x128xbf16>
      %54 = vector.shape_cast %53 : vector<1x128x128xbf16> to vector<128x128xbf16>
      %cst_49 = arith.constant dense<0.000000e+00> : vector<8x128xf32>
      %55 = tpu.matmul %52, %54, %cst_49 {dimension_numbers = #tpu.dot_dimension_numbers<[1], [0], [0], [1], [0, 0, 1, 1], [], []>} : vector<8x128xbf16>, vector<128x128xbf16>, vector<8x128xf32> -> vector<8x128xf32>
      %56 = arith.addf %47, %55 : vector<8x128xf32>
      %c7_i32_50 = arith.constant 7 : i32
      %57 = arith.addi %c7_i32_50, %arg13 : i32
      %c1_i32_51 = arith.constant 1 : i32
      %58 = arith.addi %57, %c1_i32_51 : i32
      %59 = arith.index_cast %58 : i32 to index
      %c0_52 = arith.constant 0 : index
      %c0_53 = arith.constant 0 : index
      %60 = vector.load %arg11[%59, %c0_52, %c0_53] : memref<21x8x128xbf16, #tpu.memory_space<vmem>>, vector<1x8x128xbf16>
      %61 = vector.shape_cast %60 : vector<1x8x128xbf16> to vector<8x128xbf16>
      %c4 = arith.constant 4 : index
      %c0_54 = arith.constant 0 : index
      %c0_55 = arith.constant 0 : index
      %62 = vector.load %arg5[%c4, %c0_54, %c0_55] : memref<9x128x128xbf16, #tpu.memory_space<vmem>>, vector<1x128x128xbf16>
      %63 = vector.shape_cast %62 : vector<1x128x128xbf16> to vector<128x128xbf16>
      %cst_56 = arith.constant dense<0.000000e+00> : vector<8x128xf32>
      %64 = tpu.matmul %61, %63, %cst_56 {dimension_numbers = #tpu.dot_dimension_numbers<[1], [0], [0], [1], [0, 0, 1, 1], [], []>} : vector<8x128xbf16>, vector<128x128xbf16>, vector<8x128xf32> -> vector<8x128xf32>
      %65 = arith.addf %56, %64 : vector<8x128xf32>
      %c7_i32_57 = arith.constant 7 : i32
      %66 = arith.addi %c7_i32_57, %arg13 : i32
      %c2_i32_58 = arith.constant 2 : i32
      %67 = arith.addi %66, %c2_i32_58 : i32
      %68 = arith.index_cast %67 : i32 to index
      %c0_59 = arith.constant 0 : index
      %c0_60 = arith.constant 0 : index
      %69 = vector.load %arg11[%68, %c0_59, %c0_60] : memref<21x8x128xbf16, #tpu.memory_space<vmem>>, vector<1x8x128xbf16>
      %70 = vector.shape_cast %69 : vector<1x8x128xbf16> to vector<8x128xbf16>
      %c5 = arith.constant 5 : index
      %c0_61 = arith.constant 0 : index
      %c0_62 = arith.constant 0 : index
      %71 = vector.load %arg5[%c5, %c0_61, %c0_62] : memref<9x128x128xbf16, #tpu.memory_space<vmem>>, vector<1x128x128xbf16>
      %72 = vector.shape_cast %71 : vector<1x128x128xbf16> to vector<128x128xbf16>
      %cst_63 = arith.constant dense<0.000000e+00> : vector<8x128xf32>
      %73 = tpu.matmul %70, %72, %cst_63 {dimension_numbers = #tpu.dot_dimension_numbers<[1], [0], [0], [1], [0, 0, 1, 1], [], []>} : vector<8x128xbf16>, vector<128x128xbf16>, vector<8x128xf32> -> vector<8x128xf32>
      %74 = arith.addf %65, %73 : vector<8x128xf32>
      %c14_i32 = arith.constant 14 : i32
      %75 = arith.addi %c14_i32, %arg13 : i32
      %c0_i32_64 = arith.constant 0 : i32
      %76 = arith.addi %75, %c0_i32_64 : i32
      %77 = arith.index_cast %76 : i32 to index
      %c0_65 = arith.constant 0 : index
      %c0_66 = arith.constant 0 : index
      %78 = vector.load %arg11[%77, %c0_65, %c0_66] : memref<21x8x128xbf16, #tpu.memory_space<vmem>>, vector<1x8x128xbf16>
      %79 = vector.shape_cast %78 : vector<1x8x128xbf16> to vector<8x128xbf16>
      %c6 = arith.constant 6 : index
      %c0_67 = arith.constant 0 : index
      %c0_68 = arith.constant 0 : index
      %80 = vector.load %arg5[%c6, %c0_67, %c0_68] : memref<9x128x128xbf16, #tpu.memory_space<vmem>>, vector<1x128x128xbf16>
      %81 = vector.shape_cast %80 : vector<1x128x128xbf16> to vector<128x128xbf16>
      %cst_69 = arith.constant dense<0.000000e+00> : vector<8x128xf32>
      %82 = tpu.matmul %79, %81, %cst_69 {dimension_numbers = #tpu.dot_dimension_numbers<[1], [0], [0], [1], [0, 0, 1, 1], [], []>} : vector<8x128xbf16>, vector<128x128xbf16>, vector<8x128xf32> -> vector<8x128xf32>
      %83 = arith.addf %74, %82 : vector<8x128xf32>
      %c14_i32_70 = arith.constant 14 : i32
      %84 = arith.addi %c14_i32_70, %arg13 : i32
      %c1_i32_71 = arith.constant 1 : i32
      %85 = arith.addi %84, %c1_i32_71 : i32
      %86 = arith.index_cast %85 : i32 to index
      %c0_72 = arith.constant 0 : index
      %c0_73 = arith.constant 0 : index
      %87 = vector.load %arg11[%86, %c0_72, %c0_73] : memref<21x8x128xbf16, #tpu.memory_space<vmem>>, vector<1x8x128xbf16>
      %88 = vector.shape_cast %87 : vector<1x8x128xbf16> to vector<8x128xbf16>
      %c7 = arith.constant 7 : index
      %c0_74 = arith.constant 0 : index
      %c0_75 = arith.constant 0 : index
      %89 = vector.load %arg5[%c7, %c0_74, %c0_75] : memref<9x128x128xbf16, #tpu.memory_space<vmem>>, vector<1x128x128xbf16>
      %90 = vector.shape_cast %89 : vector<1x128x128xbf16> to vector<128x128xbf16>
      %cst_76 = arith.constant dense<0.000000e+00> : vector<8x128xf32>
      %91 = tpu.matmul %88, %90, %cst_76 {dimension_numbers = #tpu.dot_dimension_numbers<[1], [0], [0], [1], [0, 0, 1, 1], [], []>} : vector<8x128xbf16>, vector<128x128xbf16>, vector<8x128xf32> -> vector<8x128xf32>
      %92 = arith.addf %83, %91 : vector<8x128xf32>
      %c14_i32_77 = arith.constant 14 : i32
      %93 = arith.addi %c14_i32_77, %arg13 : i32
      %c2_i32_78 = arith.constant 2 : i32
      %94 = arith.addi %93, %c2_i32_78 : i32
      %95 = arith.index_cast %94 : i32 to index
      %c0_79 = arith.constant 0 : index
      %c0_80 = arith.constant 0 : index
      %96 = vector.load %arg11[%95, %c0_79, %c0_80] : memref<21x8x128xbf16, #tpu.memory_space<vmem>>, vector<1x8x128xbf16>
      %97 = vector.shape_cast %96 : vector<1x8x128xbf16> to vector<8x128xbf16>
      %c8 = arith.constant 8 : index
      %c0_81 = arith.constant 0 : index
      %c0_82 = arith.constant 0 : index
      %98 = vector.load %arg5[%c8, %c0_81, %c0_82] : memref<9x128x128xbf16, #tpu.memory_space<vmem>>, vector<1x128x128xbf16>
      %99 = vector.shape_cast %98 : vector<1x128x128xbf16> to vector<128x128xbf16>
      %cst_83 = arith.constant dense<0.000000e+00> : vector<8x128xf32>
      %100 = tpu.matmul %97, %99, %cst_83 {dimension_numbers = #tpu.dot_dimension_numbers<[1], [0], [0], [1], [0, 0, 1, 1], [], []>} : vector<8x128xbf16>, vector<128x128xbf16>, vector<8x128xf32> -> vector<8x128xf32>
      %101 = arith.addf %92, %100 : vector<8x128xf32>
      %102 = arith.addf %101, %7 : vector<8x128xf32>
      %cst_84 = arith.constant 0.000000e+00 : f32
      %103 = vector.broadcast %cst_84 : f32 to vector<8x128xf32>
      %104 = arith.maximumf %102, %103 : vector<8x128xf32>
      %105 = arith.truncf %104 : vector<8x128xf32> to vector<8x128xbf16>
      %c0_85 = arith.constant 0 : index
      %c0_86 = arith.constant 0 : index
      %106 = vector.load %arg12[%c0_85, %c0_86] : memref<8x128xf32, #tpu.memory_space<vmem>>, vector<8x128xf32>
      %107 = arith.index_cast %arg13 : i32 to index
      %c0_87 = arith.constant 0 : index
      %c0_88 = arith.constant 0 : index
      %108 = vector.load %arg7[%107, %c0_87, %c0_88] : memref<5x128x128xbf16, #tpu.memory_space<vmem>>, vector<1x128x128xbf16>
      %109 = vector.shape_cast %108 : vector<1x128x128xbf16> to vector<128x128xbf16>
      %cst_89 = arith.constant dense<0.000000e+00> : vector<8x128xf32>
      %110 = tpu.matmul %105, %109, %cst_89 {dimension_numbers = #tpu.dot_dimension_numbers<[1], [0], [0], [1], [0, 0, 1, 1], [], []>} : vector<8x128xbf16>, vector<128x128xbf16>, vector<8x128xf32> -> vector<8x128xf32>
      %111 = arith.addf %106, %110 : vector<8x128xf32>
      %c0_90 = arith.constant 0 : index
      %c0_91 = arith.constant 0 : index
      %112 = vector.load %arg12[%c0_90, %c0_91] : memref<8x128xf32, #tpu.memory_space<vmem>>, vector<8x128xf32>
      tpu.vector_store %arg12[%c0_90, %c0_91], %111 {strides = array<i32>} : memref<8x128xf32, #tpu.memory_space<vmem>>, vector<8x128xf32>,
    }
    %c5_i32_10 = arith.constant 5 : i32
    %c0_11 = arith.constant 0 : index
    %c0_12 = arith.constant 0 : index
    %9 = vector.load %arg12[%c0_11, %c0_12] : memref<8x128xf32, #tpu.memory_space<vmem>>, vector<8x128xf32>
    %c0_13 = arith.constant 0 : index
    %c0_14 = arith.constant 0 : index
    %10 = vector.load %arg8[%c0_13, %c0_14] : memref<1x128xf32, #tpu.memory_space<vmem>>, vector<1x128xf32>
    %11 = vector.broadcast %10 : vector<1x128xf32> to vector<8x128xf32>
    %12 = arith.addf %9, %11 : vector<8x128xf32>
    %cst_15 = arith.constant 5.65685415 : f32
    %13 = vector.broadcast %cst_15 : f32 to vector<8x128xf32>
    %14 = arith.mulf %12, %13 : vector<8x128xf32>
    %c0_16 = arith.constant 0 : index
    %c0_17 = arith.constant 0 : index
    %15 = vector.load %arg9[%c0_16, %c0_17] : memref<8x128xf32, #tpu.memory_space<vmem>>, vector<8x128xf32>
    %16 = arith.addf %14, %15 : vector<8x128xf32>
    %c0_18 = arith.constant 0 : index
    %c0_19 = arith.constant 0 : index
    %c0_20 = arith.constant 0 : index
    %17 = vector.load %arg10[%c0_18, %c0_19, %c0_20] : memref<1x8x128xf32, #tpu.memory_space<vmem>>, vector<1x8x128xf32>
    %18 = vector.shape_cast %17 : vector<1x8x128xf32> to vector<8x128xf32>
    %19 = vector.shape_cast %16 : vector<8x128xf32> to vector<1x8x128xf32>
    tpu.vector_store %arg10[%c0_18, %c0_19, %c0_20], %19 {strides = array<i32>} : memref<1x8x128xf32, #tpu.memory_space<vmem>>, vector<1x8x128xf32>,
    return
  }
  func.func @transform_0(%arg0: i32, %arg1: i32) -> (i32, i32, i32, i32) {
    %c1_i32 = arith.constant 1 : i32
    %0 = arith.muli %arg0, %c1_i32 : i32
    %1 = arith.addi %0, %arg1 : i32
    %c0_i32 = arith.constant 0 : i32
    %c0_i32_0 = arith.constant 0 : i32
    %c0_i32_1 = arith.constant 0 : i32
    %c0_i32_2 = arith.constant 0 : i32
    return %1, %c0_i32, %c0_i32_0, %c0_i32_1 : i32, i32, i32, i32
  }
  func.func @transform_1(%arg0: i32, %arg1: i32) -> (i32, i32) {
    %c0_i32 = arith.constant 0 : i32
    %c0_i32_0 = arith.constant 0 : i32
    %c0_i32_1 = arith.constant 0 : i32
    return %c0_i32, %c0_i32_0 : i32, i32
  }
  func.func @transform_2(%arg0: i32, %arg1: i32) -> (i32, i32) {
    %c0_i32 = arith.constant 0 : i32
    %c0_i32_0 = arith.constant 0 : i32
    %c0_i32_1 = arith.constant 0 : i32
    return %c0_i32, %c0_i32_0 : i32, i32
  }
  func.func @transform_3(%arg0: i32, %arg1: i32) -> (i32, i32, i32) {
    %c0_i32 = arith.constant 0 : i32
    %c0_i32_0 = arith.constant 0 : i32
    %c0_i32_1 = arith.constant 0 : i32
    %c0_i32_2 = arith.constant 0 : i32
    return %c0_i32, %c0_i32_0, %c0_i32_1 : i32, i32, i32
  }
  func.func @transform_4(%arg0: i32, %arg1: i32) -> (i32, i32) {
    %c0_i32 = arith.constant 0 : i32
    %c0_i32_0 = arith.constant 0 : i32
    %c0_i32_1 = arith.constant 0 : i32
    return %c0_i32, %c0_i32_0 : i32, i32
  }
  func.func @transform_5(%arg0: i32, %arg1: i32) -> (i32, i32, i32) {
    %c0_i32 = arith.constant 0 : i32
    %c0_i32_0 = arith.constant 0 : i32
    %c0_i32_1 = arith.constant 0 : i32
    %c0_i32_2 = arith.constant 0 : i32
    return %c0_i32, %c0_i32_0, %c0_i32_1 : i32, i32, i32
  }
  func.func @transform_6(%arg0: i32, %arg1: i32) -> (i32, i32) {
    %c0_i32 = arith.constant 0 : i32
    %c0_i32_0 = arith.constant 0 : i32
    %c0_i32_1 = arith.constant 0 : i32
    return %c0_i32, %c0_i32_0 : i32, i32
  }
  func.func @transform_7(%arg0: i32, %arg1: i32) -> (i32, i32) {
    %c0_i32 = arith.constant 0 : i32
    %c0_i32_0 = arith.constant 0 : i32
    return %arg1, %c0_i32 : i32, i32
  }
  func.func @transform_8(%arg0: i32, %arg1: i32) -> (i32, i32, i32) {
    %c0_i32 = arith.constant 0 : i32
    %c0_i32_0 = arith.constant 0 : i32
    return %arg0, %arg1, %c0_i32 : i32, i32, i32
  }
}

</mosaic_0001>

<llo_original>
// kernel: conv2d_subsampling2_forward.1
$region0: #{conv2d_subsampling2_forward.1}
  #allocation0 [shape = 'u32[]', space=smem, size = 0x4, offset = 0x4, fixed_abs, tag = 'smem constant byte address 0x4 - core index']
  #allocation1 [shape = 'u32[144,128]{1,0:T(1,128)}', space=vmem, size = 0x12000, scoped, tag = 'internal scratch']
  #allocation2 [shape = 'bf16[21,8,128]{2,1,0:T(8,128)(2,1)}', space=vmem, size = 0xa800, scoped, tag = 'scratch operand']
  #allocation3 [shape = 'f32[8,128]{1,0:T(8,128)}', space=vmem, size = 0x1000, scoped, tag = 'scratch operand']
  %s0 = inlined_call_operand.vmem [shape: bf16[2,7,16,16], index: 0, kind: input, shape index: {}]
  %s1 = inlined_call_operand.vmem [shape: bf16[16,128], index: 1, kind: input, shape index: {}]
  %s2 = inlined_call_operand.vmem [shape: f32[1,128], index: 2, kind: input, shape index: {}]
  %s3 = inlined_call_operand.vmem [shape: bf16[9,128,128], index: 3, kind: input, shape index: {}]
  %s4 = inlined_call_operand.vmem [shape: f32[1,128], index: 4, kind: input, shape index: {}]
  %s5 = inlined_call_operand.vmem [shape: bf16[5,128,128], index: 5, kind: input, shape index: {}]
  %s6 = inlined_call_operand.vmem [shape: f32[1,128], index: 6, kind: input, shape index: {}]
  %s7 = inlined_call_operand.vmem [shape: f32[8,128], index: 7, kind: input, shape index: {}]
  %s8 = inlined_call_operand.vmem [shape: f32[2,8,128], index: 8, kind: output, shape index: {}]
  %s9 = sld [smem:[#allocation0]]
  $region79: #{conv2d_subsampling2_forward.1} parent=0
    _
  %s11 = ssub.s32 1, %s9
  %s12 = scalar_select 0, %s11, %s9
  loop: start=0, step=1, limit=4
  $region2: #{conv2d_subsampling2_forward.1} parent=0 // loop_pre_header
    _
  $region3: #{conv2d_subsampling2_forward.1} parent=0 // loop_header
    %s14 = sphi 0, %s18
    %p15 = scmp.ge.s32.totalorder %s14, 4
    %s21 = sphi 0, %s33
    %s22 = sphi 0, %s29
    %s23 = sphi 0, %s21
    %s24 = sphi 0, %s22
    %s25 = sphi 0, %s23
    %s26 = sphi 0, %s24
    %s38 = sphi 0, %s40
    %s41 = sphi 0, %s38
    %s42 = sphi 0, %s41
    %s58 = sphi 0, %s42
    %s62 = sphi 0, %s62
    %s64 = sphi 0, %s62
    %s65 = sphi 0, %s64
    %s79 = sphi 0, %s65
    %s83 = sphi 0, %s83
    %s85 = sphi 0, %s83
    %s86 = sphi 0, %s85
    %s100 = sphi 0, %s86
    %s104 = sphi 0, %s104
    %s106 = sphi 0, %s104
    %s107 = sphi 0, %s106
    %s121 = sphi 0, %s107
    %s125 = sphi 0, %s125
    %s127 = sphi 0, %s125
    %s128 = sphi 0, %s127
    %s142 = sphi 0, %s128
    %s146 = sphi 0, %s146
    %s148 = sphi 0, %s146
    %s149 = sphi 0, %s148
    %s163 = sphi 0, %s149
    %s167 = sphi 0, %s167
    %s169 = sphi 0, %s167
    %s170 = sphi 0, %s169
    %s184 = sphi 0, %s170
    %s190 = sphi 0, %s192
    %s193 = sphi 0, %s190
    %s194 = sphi 0, %s193
    %s210 = sphi 0, %s194
    %s218 = sphi 0, %s220
    %s221 = sphi 0, %s218
    %s222 = sphi 0, %s221
    %s238 = sphi 0, %s222
  $region4: #{conv2d_subsampling2_forward.1} parent=0 // loop_header_branch
    %17 = sbr.rel (%p15) target = $region8
  $region5: #{conv2d_subsampling2_forward.1} parent=0 // loop_body
    %s19 = ssub.s32 %s14, 1
    %s20 = ssub.s32 %s14, 2
    %s27 = sadd.s32 1, %s22
    %p28 = scmp.ge.s32.totalorder %s27, 1
    %s29 = scalar_select %p28, 0, %s27
    %s30 = sadd.s32 1, %s21
    %s31 = scalar_select %p28, %s30, %s21
    %p32 = scmp.ge.s32.totalorder %s31, 2
    %s33 = scalar_select %p32, 0, %s31
    %s34 = sadd.s32 %s21, %s22
    %s35 = sadd.s32 %s33, %s29
    %s36 = ssub.s32 %s34, %s35
    %p37 = scmp.eq.s32.totalorder %s36, 0
    %s39 = sadd.s32 %s38, 1
    %s40 = scalar_select %p37, %s38, %s39
    %p43 = pneg %p37
    %p44 = scmp.eq.s32.totalorder %s14, 1
    %p45 = por %p43, %p44
    %p46 = scmp.ne.s32.totalorder %s38, %s41
    %p47 = scmp.eq.s32.totalorder %s14, 0
    %p48 = por %p46, %p47
    %p49 = scmp.ne.s32.totalorder %s38, %s41
    %p50 = scmp.eq.s32.totalorder %s19, 1
    %p51 = por %p49, %p50
    %p52 = scmp.ne.s32.totalorder %s41, %s42
    %p53 = scmp.eq.s32.totalorder %s19, 0
    %p54 = por %p52, %p53
    %p55 = scmp.ne.s32.totalorder %s41, %s42
    %p56 = scmp.eq.s32.totalorder %s20, 1
    %p57 = por %p55, %p56
    %p59 = scmp.ne.s32.totalorder %s42, %s58
    %p60 = scmp.eq.s32.totalorder %s20, 0
    %p61 = por %p59, %p60
    %s63 = sadd.s32 %s62, 1
    %p66 = scmp.eq.s32.totalorder %s14, 1
    %p67 = scmp.ne.s32.totalorder %s62, %s64
    %p68 = scmp.eq.s32.totalorder %s14, 0
    %p69 = por %p67, %p68
    %p70 = scmp.ne.s32.totalorder %s62, %s64
    %p71 = scmp.eq.s32.totalorder %s19, 1
    %p72 = por %p70, %p71
    %p73 = scmp.ne.s32.totalorder %s64, %s65
    %p74 = scmp.eq.s32.totalorder %s19, 0
    %p75 = por %p73, %p74
    %p76 = scmp.ne.s32.totalorder %s64, %s65
    %p77 = scmp.eq.s32.totalorder %s20, 1
    %p78 = por %p76, %p77
    %p80 = scmp.ne.s32.totalorder %s65, %s79
    %p81 = scmp.eq.s32.totalorder %s20, 0
    %p82 = por %p80, %p81
    %s84 = sadd.s32 %s83, 1
    %p87 = scmp.eq.s32.totalorder %s14, 1
    %p88 = scmp.ne.s32.totalorder %s83, %s85
    %p89 = scmp.eq.s32.totalorder %s14, 0
    %p90 = por %p88, %p89
    %p91 = scmp.ne.s32.totalorder %s83, %s85
    %p92 = scmp.eq.s32.totalorder %s19, 1
    %p93 = por %p91, %p92
    %p94 = scmp.ne.s32.totalorder %s85, %s86
    %p95 = scmp.eq.s32.totalorder %s19, 0
    %p96 = por %p94, %p95
    %p97 = scmp.ne.s32.totalorder %s85, %s86
    %p98 = scmp.eq.s32.totalorder %s20, 1
    %p99 = por %p97, %p98
    %p101 = scmp.ne.s32.totalorder %s86, %s100
    %p102 = scmp.eq.s32.totalorder %s20, 0
    %p103 = por %p101, %p102
    %s105 = sadd.s32 %s104, 1
    %p108 = scmp.eq.s32.totalorder %s14, 1
    %p109 = scmp.ne.s32.totalorder %s104, %s106
    %p110 = scmp.eq.s32.totalorder %s14, 0
    %p111 = por %p109, %p110
    %p112 = scmp.ne.s32.totalorder %s104, %s106
    %p113 = scmp.eq.s32.totalorder %s19, 1
    %p114 = por %p112, %p113
    %p115 = scmp.ne.s32.totalorder %s106, %s107
    %p116 = scmp.eq.s32.totalorder %s19, 0
    %p117 = por %p115, %p116
    %p118 = scmp.ne.s32.totalorder %s106, %s107
    %p119 = scmp.eq.s32.totalorder %s20, 1
    %p120 = por %p118, %p119
    %p122 = scmp.ne.s32.totalorder %s107, %s121
    %p123 = scmp.eq.s32.totalorder %s20, 0
    %p124 = por %p122, %p123
    %s126 = sadd.s32 %s125, 1
    %p129 = scmp.eq.s32.totalorder %s14, 1
    %p130 = scmp.ne.s32.totalorder %s125, %s127
    %p131 = scmp.eq.s32.totalorder %s14, 0
    %p132 = por %p130, %p131
    %p133 = scmp.ne.s32.totalorder %s125, %s127
    %p134 = scmp.eq.s32.totalorder %s19, 1
    %p135 = por %p133, %p134
    %p136 = scmp.ne.s32.totalorder %s127, %s128
    %p137 = scmp.eq.s32.totalorder %s19, 0
    %p138 = por %p136, %p137
    %p139 = scmp.ne.s32.totalorder %s127, %s128
    %p140 = scmp.eq.s32.totalorder %s20, 1
    %p141 = por %p139, %p140
    %p143 = scmp.ne.s32.totalorder %s128, %s142
    %p144 = scmp.eq.s32.totalorder %s20, 0
    %p145 = por %p143, %p144
    %s147 = sadd.s32 %s146, 1
    %p150 = scmp.eq.s32.totalorder %s14, 1
    %p151 = scmp.ne.s32.totalorder %s146, %s148
    %p152 = scmp.eq.s32.totalorder %s14, 0
    %p153 = por %p151, %p152
    %p154 = scmp.ne.s32.totalorder %s146, %s148
    %p155 = scmp.eq.s32.totalorder %s19, 1
    %p156 = por %p154, %p155
    %p157 = scmp.ne.s32.totalorder %s148, %s149
    %p158 = scmp.eq.s32.totalorder %s19, 0
    %p159 = por %p157, %p158
    %p160 = scmp.ne.s32.totalorder %s148, %s149
    %p161 = scmp.eq.s32.totalorder %s20, 1
    %p162 = por %p160, %p161
    %p164 = scmp.ne.s32.totalorder %s149, %s163
    %p165 = scmp.eq.s32.totalorder %s20, 0
    %p166 = por %p164, %p165
    %s168 = sadd.s32 %s167, 1
    %p171 = scmp.eq.s32.totalorder %s14, 1
    %p172 = scmp.ne.s32.totalorder %s167, %s169
    %p173 = scmp.eq.s32.totalorder %s14, 0
    %p174 = por %p172, %p173
    %p175 = scmp.ne.s32.totalorder %s167, %s169
    %p176 = scmp.eq.s32.totalorder %s19, 1
    %p177 = por %p175, %p176
    %p178 = scmp.ne.s32.totalorder %s169, %s170
    %p179 = scmp.eq.s32.totalorder %s19, 0
    %p180 = por %p178, %p179
    %p181 = scmp.ne.s32.totalorder %s169, %s170
    %p182 = scmp.eq.s32.totalorder %s20, 1
    %p183 = por %p181, %p182
    %p185 = scmp.ne.s32.totalorder %s170, %s184
    %p186 = scmp.eq.s32.totalorder %s20, 0
    %p187 = por %p185, %p186
    %s188 = ssub.s32 %s22, %s29
    %p189 = scmp.eq.s32.totalorder %s188, 0
    %s191 = sadd.s32 %s190, 1
    %s192 = scalar_select %p189, %s190, %s191
    %p195 = pneg %p189
    %p196 = scmp.eq.s32.totalorder %s14, 1
    %p197 = por %p195, %p196
    %p198 = scmp.ne.s32.totalorder %s190, %s193
    %p199 = scmp.eq.s32.totalorder %s14, 0
    %p200 = por %p198, %p199
    %p201 = scmp.ne.s32.totalorder %s190, %s193
    %p202 = scmp.eq.s32.totalorder %s19, 1
    %p203 = por %p201, %p202
    %p204 = scmp.ne.s32.totalorder %s193, %s194
    %p205 = scmp.eq.s32.totalorder %s19, 0
    %p206 = por %p204, %p205
    %p207 = scmp.ne.s32.totalorder %s193, %s194
    %p208 = scmp.eq.s32.totalorder %s20, 1
    %p209 = por %p207, %p208
    %p211 = scmp.ne.s32.totalorder %s194, %s210
    %p212 = scmp.eq.s32.totalorder %s20, 0
    %p213 = por %p211, %p212
    %s214 = ssub.s32 %s21, %s33
    %s215 = ssub.s32 %s22, %s29
    %s216 = sor.u32 %s214, %s215
    %p217 = scmp.eq.s32.totalorder %s216, 0
    %s219 = sadd.s32 %s218, 1
    %s220 = scalar_select %p217, %s218, %s219
    %p223 = pneg %p217
    %p224 = scmp.eq.s32.totalorder %s14, 1
    %p225 = por %p223, %p224
    %p226 = scmp.ne.s32.totalorder %s218, %s221
    %p227 = scmp.eq.s32.totalorder %s14, 0
    %p228 = por %p226, %p227
    %p229 = scmp.ne.s32.totalorder %s218, %s221
    %p230 = scmp.eq.s32.totalorder %s19, 1
    %p231 = por %p229, %p230
    %p232 = scmp.ne.s32.totalorder %s221, %s222
    %p233 = scmp.eq.s32.totalorder %s19, 0
    %p234 = por %p232, %p233
    %p235 = scmp.ne.s32.totalorder %s221, %s222
    %p236 = scmp.eq.s32.totalorder %s20, 1
    %p237 = por %p235, %p236
    %p239 = scmp.ne.s32.totalorder %s222, %s238
    %p240 = scmp.eq.s32.totalorder %s20, 0
    %p241 = por %p239, %p240
    %p242 = scmp.le.s32.totalorder 1, %s14
    %p243 = scmp.lt.s32.totalorder %s14, 3
    %p244 = pnand %p242, %p243
    %p245 = pneg %p244
    // Predicated region
    $region9: #{conv2d_subsampling2_forward.1} parent=5 // pred_check
      _
    $region10: #{conv2d_subsampling2_forward.1} parent=5 // pred_check_branch
      %247 = sbr.rel (%p244) target = $region12
    $region11: #{conv2d_subsampling2_forward.1} parent=5 // pred_region
      %s248 = ssub.s32 %s14, 1
      // Predicated region
      $region13: #{conv2d_subsampling2_forward.1} parent=11 // pred_check
        %p249 = pneg %p75
      $region14: #{conv2d_subsampling2_forward.1} parent=11 // pred_check_branch
        %251 = sbr.rel (%p249) target = $region16
      $region15: #{conv2d_subsampling2_forward.1} parent=11 // pred_region
        _
      $region16: #{conv2d_subsampling2_forward.1} parent=11 // pred_fallthru
        _
      // Predicated region
      $region17: #{conv2d_subsampling2_forward.1} parent=11 // pred_check
        %p252 = pneg %p96
      $region18: #{conv2d_subsampling2_forward.1} parent=11 // pred_check_branch
        %254 = sbr.rel (%p252) target = $region20
      $region19: #{conv2d_subsampling2_forward.1} parent=11 // pred_region
        _
      $region20: #{conv2d_subsampling2_forward.1} parent=11 // pred_fallthru
        _
      // Predicated region
      $region21: #{conv2d_subsampling2_forward.1} parent=11 // pred_check
        %p255 = pneg %p117
      $region22: #{conv2d_subsampling2_forward.1} parent=11 // pred_check_branch
        %257 = sbr.rel (%p255) target = $region24
      $region23: #{conv2d_subsampling2_forward.1} parent=11 // pred_region
        _
      $region24: #{conv2d_subsampling2_forward.1} parent=11 // pred_fallthru
        _
      // Predicated region
      $region25: #{conv2d_subsampling2_forward.1} parent=11 // pred_check
        %p258 = pneg %p138
      $region26: #{conv2d_subsampling2_forward.1} parent=11 // pred_check_branch
        %260 = sbr.rel (%p258) target = $region28
      $region27: #{conv2d_subsampling2_forward.1} parent=11 // pred_region
        _
      $region28: #{conv2d_subsampling2_forward.1} parent=11 // pred_fallthru
        _
      // Predicated region
      $region29: #{conv2d_subsampling2_forward.1} parent=11 // pred_check
        %p261 = pneg %p159
      $region30: #{conv2d_subsampling2_forward.1} parent=11 // pred_check_branch
        %263 = sbr.rel (%p261) target = $region32
      $region31: #{conv2d_subsampling2_forward.1} parent=11 // pred_region
        _
      $region32: #{conv2d_subsampling2_forward.1} parent=11 // pred_fallthru
        _
      // Predicated region
      $region33: #{conv2d_subsampling2_forward.1} parent=11 // pred_check
        %p264 = pneg %p180
      $region34: #{conv2d_subsampling2_forward.1} parent=11 // pred_check_branch
        %266 = sbr.rel (%p264) target = $region36
      $region35: #{conv2d_subsampling2_forward.1} parent=11 // pred_region
        _
      $region36: #{conv2d_subsampling2_forward.1} parent=11 // pred_fallthru
        _
      // Predicated region
      $region37: #{conv2d_subsampling2_forward.1} parent=11 // pred_check
        %p267 = pneg %p206
      $region38: #{conv2d_subsampling2_forward.1} parent=11 // pred_check_branch
        %269 = sbr.rel (%p267) target = $region40
      $region39: #{conv2d_subsampling2_forward.1} parent=11 // pred_region
        %p270 = scmp.lt.s32.totalorder %s24, 0
        %s271 = scalar_select %p270, %s24, 0
        %s272 = smul.addr %s271, 8
        %s273 = scalar_lea.vmem %s7, %s272
      $region40: #{conv2d_subsampling2_forward.1} parent=11 // pred_fallthru
        _
    $region12: #{conv2d_subsampling2_forward.1} parent=5 // pred_fallthru
      _
    %p274 = scmp.lt.s32.totalorder %s14, 2
    // Predicated region
    $region41: #{conv2d_subsampling2_forward.1} parent=5 // pred_check
      %p275 = pneg %p274
    $region42: #{conv2d_subsampling2_forward.1} parent=5 // pred_check_branch
      %277 = sbr.rel (%p275) target = $region44
    $region43: #{conv2d_subsampling2_forward.1} parent=5 // pred_region
      // Predicated region
      $region45: #{conv2d_subsampling2_forward.1} parent=43 // pred_check
        %p278 = pneg %p48
      $region46: #{conv2d_subsampling2_forward.1} parent=43 // pred_check_branch
        %280 = sbr.rel (%p278) target = $region48
      $region47: #{conv2d_subsampling2_forward.1} parent=43 // pred_region
        %s281 = sadd.s32 %s21, %s22
        %p282 = scmp.lt.s32.totalorder %s281, 1
        %s283 = scalar_select %p282, %s281, 1
        %s284 = smul.addr %s283, 14
        %s285 = smul.addr %s284, 4
        %s286 = scalar_lea.vmem %s0, %s285
        %s287 = sadd.s32 %s21, %s22
      $region48: #{conv2d_subsampling2_forward.1} parent=43 // pred_fallthru
        _
    $region44: #{conv2d_subsampling2_forward.1} parent=5 // pred_fallthru
      _
    %p288 = scmp.le.s32.totalorder 1, %s14
    %p289 = scmp.lt.s32.totalorder %s14, 3
    %p290 = pnand %p288, %p289
    %p291 = pneg %p290
    // Predicated region
    $region49: #{conv2d_subsampling2_forward.1} parent=5 // pred_check
      _
    $region50: #{conv2d_subsampling2_forward.1} parent=5 // pred_check_branch
      %293 = sbr.rel (%p290) target = $region52
    $region51: #{conv2d_subsampling2_forward.1} parent=5 // pred_region
      %s294 = ssub.s32 %s14, 1
      %s295 = sadd.s32 %s23, %s24
      %p296 = scmp.lt.s32.totalorder %s295, 1
      %s297 = scalar_select %p296, %s295, 1
      %s298 = smul.addr %s297, 14
      %s299 = smul.addr %s298, 4
      %s300 = scalar_lea.vmem %s0, %s299
      %p301 = pneg %p54
      %p302 = pneg %p51
      %p303 = pneg %p75
      %p304 = pneg %p72
      %p305 = pneg %p96
      %p306 = pneg %p93
      %p307 = pneg %p117
      %p308 = pneg %p114
      %p309 = pneg %p138
      %p310 = pneg %p135
      %p311 = pneg %p159
      %p312 = pneg %p156
      %p313 = pneg %p180
      %p314 = pneg %p177
      %p315 = scmp.lt.s32.totalorder %s24, 0
      %s316 = scalar_select %p315, %s24, 0
      %s317 = smul.addr %s316, 8
      %s318 = scalar_lea.vmem %s7, %s317
      %p319 = pneg %p206
      %p320 = pneg %p203
      %p321 = pneg %p234
      %p322 = pneg %p231
      %p323 = scmp.lt.s32.totalorder %s23, 1
      %s324 = scalar_select %p323, %s23, 1
      %p325 = scmp.lt.s32.totalorder %s24, 0
      %s326 = scalar_select %p325, %s24, 0
      %s327 = sadd.s32 %s326, %s324
      %s328 = smul.addr %s327, 8
      %s329 = scalar_lea.vmem %s8, %s328
      %s330 = sadd.s32 %s23, %s24
      %p331 = scmp.lt.s32.totalorder %s330, 1
      %s332 = scalar_select %p331, %s330, 1
      %s333 = smul.addr %s332, 14
      %s334 = smul.addr %s333, 4
      %s335 = scalar_lea.vmem %s0, %s334
      %s336 = sadd.s32 %s23, %s24
      %p337 = scmp.lt.s32.totalorder %s24, 0
      %s338 = scalar_select %p337, %s24, 0
      %s339 = smul.addr %s338, 8
      %s340 = scalar_lea.vmem %s7, %s339
      %p341 = scmp.lt.s32.totalorder %s23, 1
      %s342 = scalar_select %p341, %s23, 1
      %p343 = scmp.lt.s32.totalorder %s24, 0
      %s344 = scalar_select %p343, %s24, 0
      %s345 = sadd.s32 %s344, %s342
      %s346 = smul.addr %s345, 8
      %s347 = scalar_lea.vmem %s8, %s346
      %v349 = vld [vmem:[%s1] sm:$0xf]
      %v350 = vld [vmem:[%s1 + $0x4] sm:$0xf]
      %v351 = vld [vmem:[%s2] sm:$0x1]
      loop: start=0, step=1, limit=7
      $region53: #{conv2d_subsampling2_forward.1} parent=51 // loop_pre_header
        _
      $region54: #{conv2d_subsampling2_forward.1} parent=51 // loop_header
        %s353 = sphi 0, %s357
        %p354 = scmp.ge.s32.totalorder %s353, 7
      $region55: #{conv2d_subsampling2_forward.1} parent=51 // loop_header_branch
        %356 = sbr.rel (%p354) target = $region59
      $region56: #{conv2d_subsampling2_forward.1} parent=51 // loop_body
        %s358 = smul.u32 %s353, 2
        %s359 = smul.addr %s358, 4
        %s360 = scalar_lea.vmem %s335, %s359
        %v361 = vld [vmem:[%s360] sm:$0xf]
        %v362 = vld [vmem:[%s360 + $0x4] sm:$0xf]
        %v364 = vlaneseq
        %v365 = vshrl.u32 %v364, 7
        %v366 = vsub.s32 0, %v365
        %v367 = vrot.slane %v351, %v366
        %v371 = vunpack.c.l.b16 %v361
        %v372 = vunpack.c.l.b16 %v362
        %v373 = vpack.c.b16 %v372, %v371
        %v376 = vunpack.c.l.b16 %v349
        %v377 = vunpack.c.l.b16 %v350
        %v378 = vpack.c.b16 %v377, %v376
        %vm380 = vcmask 130048
        %v382 = vsel %vm380, %v373, 0
        %384 = vmatprep.subr.bf16.mxu0 0
        %385 = vmatpush1.bf16.msra.mxu0 %v378
        %386 = vmatprep.subr.bf16.mxu0 0
        %387 = vmatpush1.bf16.msra.mxu0 0
        %388 = vmatprep.subr.bf16.mxu0 0
        %389 = vmatpush1.bf16.msra.mxu0 0
        %390 = vmatprep.subr.bf16.mxu0 0
        %391 = vmatpush1.bf16.msra.mxu0 0
        %392 = vmatprep.subr.bf16.mxu0 0
        %393 = vmatpush1.bf16.msra.mxu0 0
        %394 = vmatprep.subr.bf16.mxu0 0
        %395 = vmatpush1.bf16.msra.mxu0 0
        %396 = vmatprep.subr.bf16.mxu0 0
        %397 = vmatpush1.bf16.msra.mxu0 0
        %398 = vmatprep.subr.bf16.mxu0 0
        %399 = vmatpush1.bf16.msra.mxu0 0
        %400 = vmatprep.subr.bf16.mxu0 0
        %401 = vmatpush1.bf16.msra.mxu0 0
        %402 = vmatprep.subr.bf16.mxu0 0
        %403 = vmatpush1.bf16.msra.mxu0 0
        %404 = vmatprep.subr.bf16.mxu0 0
        %405 = vmatpush1.bf16.msra.mxu0 0
        %406 = vmatprep.subr.bf16.mxu0 0
        %407 = vmatpush1.bf16.msra.mxu0 0
        %408 = vmatprep.subr.bf16.mxu0 0
        %409 = vmatpush1.bf16.msra.mxu0 0
        %410 = vmatprep.subr.bf16.mxu0 0
        %411 = vmatpush1.bf16.msra.mxu0 0
        %412 = vmatprep.subr.bf16.mxu0 0
        %413 = vmatpush1.bf16.msra.mxu0 0
        %414 = vmatprep.subr.bf16.mxu0 0
        %415 = vmatpush1.bf16.msra.mxu0 0
        %416 = vmatprep.mubr.bf16.mxu0 0
        %417 = vmatmul.mubr.bf16.gmra.mrb[0].mxu0 %v382
        %v418 = vpop.f32.mrb[0].mxu0
        %v419 = vadd.f32 %v367, %v418
        %v420 = vpop.f32.mrb[0].mxu0
        %v421 = vpop.f32.mrb[0].mxu0
        %v422 = vadd.f32 %v367, %v421
        %v423 = vpop.f32.mrb[0].mxu0
        %424 = vdwg.mxu0
        %v425 = vmax.f32 %v419, 0.0
        %v426 = vmax.f32 %v422, 0.0
        %v427 = vpack.c.bf16 %v426, %v425
        %s428 = smul.addr %s353, 4
        %s429 = scalar_lea.vmem [#allocation2], %s428
        %430 = vst [vmem:[%s429] sm:$0xf] %v427
        %s431 = sadd.s32 %s353, 7
        %v433 = vunpack.c.l.b16 %v427
        %v434 = vunpack.c.h.b16 %v427
        %v435 = vpack.c.b16 %v433, %v433
        %v436 = vpack.c.b16 %v434, %v434
        %vm437 = vsmask.f32 3328
        %vm438 = vsmask.f32 7440
        %vm439 = vmor %vm437, %vm438
        %v441 = vshrl.u32 %v435, 16
        %v443 = vrot.slane %v441, 4
        %v444 = vshll.u32 %v435, 16
        %v446 = vrot.slane %v444, 5
        %v447 = vor.u32 %v443, %v446
        %v448 = vrot.slane %v447, 4
        %v450 = vshll.u32 %v436, 16
        %v452 = vrot.slane %v450, 5
        %v453 = vsel %vm439, %v448, %v452
        %s455 = smul.addr %s431, 4
        %s456 = scalar_lea.vmem [#allocation2], %s455
        %457 = vst [vmem:[%s456] sm:$0xf] %v453
        %s458 = sadd.s32 %s353, 14
        %vm459 = vcmask 1042432
        %vm460 = vcmask 1046532
        %vm461 = vmor %vm459, %vm460
        %v462 = vrot.slane %v435, 5
        %v463 = vrot.slane %v462, 4
        %v464 = vrot.slane %v436, 5
        %v465 = vsel %vm461, %v463, %v464
        %s467 = smul.addr %s458, 4
        %s468 = scalar_lea.vmem [#allocation2], %s467
        %469 = vst [vmem:[%s468] sm:$0xf] %v465
      $region57: #{conv2d_subsampling2_forward.1} parent=51 // loop_footer
        %s357 = sadd.s32 1, %s353
      $region58: #{conv2d_subsampling2_forward.1} parent=51 // loop_footer_branch
        %352 = sbr.rel target = $region54
      $region59: #{conv2d_subsampling2_forward.1} parent=51 // loop_exit
        _
      %470 = vst [vmem:[#allocation3] sm:$0xff] 0.0
      %v471 = vld [vmem:[%s4] sm:$0x1]
      %v473 = vlaneseq
      %v474 = vshrl.u32 %v473, 7
      %v475 = vsub.s32 0, %v474
      %v476 = vrot.slane %v471, %v475
      loop: start=0, step=1, limit=5
      $region60: #{conv2d_subsampling2_forward.1} parent=51 // loop_pre_header
        _
      $region61: #{conv2d_subsampling2_forward.1} parent=51 // loop_header
        %s479 = sphi 0, %s483
        %p480 = scmp.ge.s32.totalorder %s479, 5
      $region62: #{conv2d_subsampling2_forward.1} parent=51 // loop_header_branch
        %482 = sbr.rel (%p480) target = $region66
      $region63: #{conv2d_subsampling2_forward.1} parent=51 // loop_body
        %s484 = smul.addr %s479, 4
        %s485 = scalar_lea.vmem [#allocation2], %s484
        %v486 = vld [vmem:[%s485] sm:$0xf]
        %v487 = vld [vmem:[%s3] sm:$0xf]
        %v488 = vld [vmem:[%s3 + $0x4] sm:$0xf]
        %v489 = vld [vmem:[%s3 + $0x8] sm:$0xf]
        %v490 = vld [vmem:[%s3 + $0xc] sm:$0xf]
        %v491 = vld [vmem:[%s3 + $0x10] sm:$0xf]
        %v492 = vld [vmem:[%s3 + $0x14] sm:$0xf]
        %v493 = vld [vmem:[%s3 + $0x18] sm:$0xf]
        %v494 = vld [vmem:[%s3 + $0x1c] sm:$0xf]
        %v495 = vld [vmem:[%s3 + $0x20] sm:$0xf]
        %v496 = vld [vmem:[%s3 + $0x24] sm:$0xf]
        %v497 = vld [vmem:[%s3 + $0x28] sm:$0xf]
        %v498 = vld [vmem:[%s3 + $0x2c] sm:$0xf]
        %v499 = vld [vmem:[%s3 + $0x30] sm:$0xf]
        %v500 = vld [vmem:[%s3 + $0x34] sm:$0xf]
        %v501 = vld [vmem:[%s3 + $0x38] sm:$0xf]
        %v502 = vld [vmem:[%s3 + $0x3c] sm:$0xf]
        %s503 = sadd.s32 %s479, 1
        %s504 = smul.addr %s503, 4
        %s505 = scalar_lea.vmem [#allocation2], %s504
        %v506 = vld [vmem:[%s505] sm:$0xf]
        %s507 = scalar_lea.vmem %s3, 64
        %v508 = vld [vmem:[%s507] sm:$0xf]
        %v509 = vld [vmem:[%s507 + $0x4] sm:$0xf]
        %v510 = vld [vmem:[%s507 + $0x8] sm:$0xf]
        %v511 = vld [vmem:[%s507 + $0xc] sm:$0xf]
        %v512 = vld [vmem:[%s507 + $0x10] sm:$0xf]
        %v513 = vld [vmem:[%s507 + $0x14] sm:$0xf]
        %v514 = vld [vmem:[%s507 + $0x18] sm:$0xf]
        %v515 = vld [vmem:[%s507 + $0x1c] sm:$0xf]
        %v516 = vld [vmem:[%s507 + $0x20] sm:$0xf]
        %v517 = vld [vmem:[%s507 + $0x24] sm:$0xf]
        %v518 = vld [vmem:[%s507 + $0x28] sm:$0xf]
        %v519 = vld [vmem:[%s507 + $0x2c] sm:$0xf]
        %v520 = vld [vmem:[%s507 + $0x30] sm:$0xf]
        %v521 = vld [vmem:[%s507 + $0x34] sm:$0xf]
        %v522 = vld [vmem:[%s507 + $0x38] sm:$0xf]
        %v523 = vld [vmem:[%s507 + $0x3c] sm:$0xf]
        %v540 = vunpack.c.l.b16 %v508
        %v541 = vunpack.c.l.b16 %v509
        %v542 = vunpack.c.l.b16 %v510
        %v543 = vunpack.c.l.b16 %v511
        %v544 = vunpack.c.l.b16 %v512
        %v545 = vunpack.c.l.b16 %v513
        %v546 = vunpack.c.l.b16 %v514
        %v547 = vunpack.c.l.b16 %v515
        %v548 = vunpack.c.l.b16 %v516
        %v549 = vunpack.c.l.b16 %v517
        %v550 = vunpack.c.l.b16 %v518
        %v551 = vunpack.c.l.b16 %v519
        %v552 = vunpack.c.l.b16 %v520
        %v553 = vunpack.c.l.b16 %v521
        %v554 = vunpack.c.l.b16 %v522
        %v555 = vunpack.c.l.b16 %v523
        %v556 = vpack.c.b16 %v541, %v540
        %v557 = vpack.c.b16 %v543, %v542
        %v558 = vpack.c.b16 %v545, %v544
        %v559 = vpack.c.b16 %v547, %v546
        %v560 = vpack.c.b16 %v549, %v548
        %v561 = vpack.c.b16 %v551, %v550
        %v562 = vpack.c.b16 %v553, %v552
        %v563 = vpack.c.b16 %v555, %v554
        %572 = vmatprep.subr.bf16.mxu0 0
        %573 = vmatpush1.bf16.msra.mxu0 %v556
        %574 = vmatprep.subr.bf16.mxu0 0
        %575 = vmatpush1.bf16.msra.mxu0 %v557
        %576 = vmatprep.subr.bf16.mxu0 0
        %577 = vmatpush1.bf16.msra.mxu0 %v558
        %578 = vmatprep.subr.bf16.mxu0 0
        %579 = vmatpush1.bf16.msra.mxu0 %v559
        %580 = vmatprep.subr.bf16.mxu0 0
        %581 = vmatpush1.bf16.msra.mxu0 %v560
        %582 = vmatprep.subr.bf16.mxu0 0
        %583 = vmatpush1.bf16.msra.mxu0 %v561
        %584 = vmatprep.subr.bf16.mxu0 0
        %585 = vmatpush1.bf16.msra.mxu0 %v562
        %586 = vmatprep.subr.bf16.mxu0 0
        %587 = vmatpush1.bf16.msra.mxu0 %v563
        %588 = vmatprep.subr.bf16.mxu0 0
        %589 = vmatpush1.bf16.msra.mxu0 0
        %590 = vmatprep.subr.bf16.mxu0 0
        %591 = vmatpush1.bf16.msra.mxu0 0
        %592 = vmatprep.subr.bf16.mxu0 0
        %593 = vmatpush1.bf16.msra.mxu0 0
        %594 = vmatprep.subr.bf16.mxu0 0
        %595 = vmatpush1.bf16.msra.mxu0 0
        %596 = vmatprep.subr.bf16.mxu0 0
        %597 = vmatpush1.bf16.msra.mxu0 0
        %598 = vmatprep.subr.bf16.mxu0 0
        %599 = vmatpush1.bf16.msra.mxu0 0
        %600 = vmatprep.subr.bf16.mxu0 0
        %601 = vmatpush1.bf16.msra.mxu0 0
        %602 = vmatprep.subr.bf16.mxu0 0
        %603 = vmatpush1.bf16.msra.mxu0 0
        %604 = vmatprep.mubr.bf16.mxu0 0
        %605 = vmatmul.mubr.bf16.gmra.mrb[0].mxu0 %v506
        %v606 = vpop.f32.mrb[0].mxu0
        %v607 = vadd.f32 0.0, %v606
        %v608 = vpop.f32.mrb[0].mxu0
        %v609 = vpop.f32.mrb[0].mxu0
        %v610 = vpop.f32.mrb[0].mxu0
        %611 = vdwg.mxu0
        %v628 = vunpack.c.l.b16 %v487
        %v629 = vunpack.c.l.b16 %v488
        %v630 = vunpack.c.l.b16 %v489
        %v631 = vunpack.c.l.b16 %v490
        %v632 = vunpack.c.l.b16 %v491
        %v633 = vunpack.c.l.b16 %v492
        %v634 = vunpack.c.l.b16 %v493
        %v635 = vunpack.c.l.b16 %v494
        %v636 = vunpack.c.l.b16 %v495
        %v637 = vunpack.c.l.b16 %v496
        %v638 = vunpack.c.l.b16 %v497
        %v639 = vunpack.c.l.b16 %v498
        %v640 = vunpack.c.l.b16 %v499
        %v641 = vunpack.c.l.b16 %v500
        %v642 = vunpack.c.l.b16 %v501
        %v643 = vunpack.c.l.b16 %v502
        %v644 = vpack.c.b16 %v629, %v628
        %v645 = vpack.c.b16 %v631, %v630
        %v646 = vpack.c.b16 %v633, %v632
        %v647 = vpack.c.b16 %v635, %v634
        %v648 = vpack.c.b16 %v637, %v636
        %v649 = vpack.c.b16 %v639, %v638
        %v650 = vpack.c.b16 %v641, %v640
        %v651 = vpack.c.b16 %v643, %v642
        %660 = vmatprep.subr.bf16.mxu0 0
        %661 = vmatpush1.bf16.msra.mxu0 %v644
        %662 = vmatprep.subr.bf16.mxu0 0
        %663 = vmatpush1.bf16.msra.mxu0 %v645
        %664 = vmatprep.subr.bf16.mxu0 0
        %665 = vmatpush1.bf16.msra.mxu0 %v646
        %666 = vmatprep.subr.bf16.mxu0 0
        %667 = vmatpush1.bf16.msra.mxu0 %v647
        %668 = vmatprep.subr.bf16.mxu0 0
        %669 = vmatpush1.bf16.msra.mxu0 %v648
        %670 = vmatprep.subr.bf16.mxu0 0
        %671 = vmatpush1.bf16.msra.mxu0 %v649
        %672 = vmatprep.subr.bf16.mxu0 0
        %673 = vmatpush1.bf16.msra.mxu0 %v650
        %674 = vmatprep.subr.bf16.mxu0 0
        %675 = vmatpush1.bf16.msra.mxu0 %v651
        %676 = vmatprep.subr.bf16.mxu0 0
        %677 = vmatpush1.bf16.msra.mxu0 0
        %678 = vmatprep.subr.bf16.mxu0 0
        %679 = vmatpush1.bf16.msra.mxu0 0
        %680 = vmatprep.subr.bf16.mxu0 0
        %681 = vmatpush1.bf16.msra.mxu0 0
        %682 = vmatprep.subr.bf16.mxu0 0
        %683 = vmatpush1.bf16.msra.mxu0 0
        %684 = vmatprep.subr.bf16.mxu0 0
        %685 = vmatpush1.bf16.msra.mxu0 0
        %686 = vmatprep.subr.bf16.mxu0 0
        %687 = vmatpush1.bf16.msra.mxu0 0
        %688 = vmatprep.subr.bf16.mxu0 0
        %689 = vmatpush1.bf16.msra.mxu0 0
        %690 = vmatprep.subr.bf16.mxu0 0
        %691 = vmatpush1.bf16.msra.mxu0 0
        %692 = vmatprep.mubr.bf16.mxu0 0
        %693 = vmatmul.mubr.bf16.gmra.mrb[0].mxu0 %v486
        %v694 = vpop.f32.mrb[0].mxu0
        %v695 = vadd.f32 %v607, %v694
        %v696 = vpop.f32.mrb[0].mxu0
        %v697 = vpop.f32.mrb[0].mxu0
        %v698 = vpop.f32.mrb[0].mxu0
        %699 = vdwg.mxu0
        %s700 = sadd.s32 %s479, 2
        %s701 = smul.addr %s700, 4
        %s702 = scalar_lea.vmem [#allocation2], %s701
        %v703 = vld [vmem:[%s702] sm:$0xf]
        %s704 = scalar_lea.vmem %s3, 128
        %v705 = vld [vmem:[%s704] sm:$0xf]
        %v706 = vld [vmem:[%s704 + $0x4] sm:$0xf]
        %v707 = vld [vmem:[%s704 + $0x8] sm:$0xf]
        %v708 = vld [vmem:[%s704 + $0xc] sm:$0xf]
        %v709 = vld [vmem:[%s704 + $0x10] sm:$0xf]
        %v710 = vld [vmem:[%s704 + $0x14] sm:$0xf]
        %v711 = vld [vmem:[%s704 + $0x18] sm:$0xf]
        %v712 = vld [vmem:[%s704 + $0x1c] sm:$0xf]
        %v713 = vld [vmem:[%s704 + $0x20] sm:$0xf]
        %v714 = vld [vmem:[%s704 + $0x24] sm:$0xf]
        %v715 = vld [vmem:[%s704 + $0x28] sm:$0xf]
        %v716 = vld [vmem:[%s704 + $0x2c] sm:$0xf]
        %v717 = vld [vmem:[%s704 + $0x30] sm:$0xf]
        %v718 = vld [vmem:[%s704 + $0x34] sm:$0xf]
        %v719 = vld [vmem:[%s704 + $0x38] sm:$0xf]
        %v720 = vld [vmem:[%s704 + $0x3c] sm:$0xf]
        %v737 = vunpack.c.l.b16 %v705
        %v738 = vunpack.c.l.b16 %v706
        %v739 = vunpack.c.l.b16 %v707
        %v740 = vunpack.c.l.b16 %v708
        %v741 = vunpack.c.l.b16 %v709
        %v742 = vunpack.c.l.b16 %v710
        %v743 = vunpack.c.l.b16 %v711
        %v744 = vunpack.c.l.b16 %v712
        %v745 = vunpack.c.l.b16 %v713
        %v746 = vunpack.c.l.b16 %v714
        %v747 = vunpack.c.l.b16 %v715
        %v748 = vunpack.c.l.b16 %v716
        %v749 = vunpack.c.l.b16 %v717
        %v750 = vunpack.c.l.b16 %v718
        %v751 = vunpack.c.l.b16 %v719
        %v752 = vunpack.c.l.b16 %v720
        %v753 = vpack.c.b16 %v738, %v737
        %v754 = vpack.c.b16 %v740, %v739
        %v755 = vpack.c.b16 %v742, %v741
        %v756 = vpack.c.b16 %v744, %v743
        %v757 = vpack.c.b16 %v746, %v745
        %v758 = vpack.c.b16 %v748, %v747
        %v759 = vpack.c.b16 %v750, %v749
        %v760 = vpack.c.b16 %v752, %v751
        %769 = vmatprep.subr.bf16.mxu0 0
        %770 = vmatpush1.bf16.msra.mxu0 %v753
        %771 = vmatprep.subr.bf16.mxu0 0
        %772 = vmatpush1.bf16.msra.mxu0 %v754
        %773 = vmatprep.subr.bf16.mxu0 0
        %774 = vmatpush1.bf16.msra.mxu0 %v755
        %775 = vmatprep.subr.bf16.mxu0 0
        %776 = vmatpush1.bf16.msra.mxu0 %v756
        %777 = vmatprep.subr.bf16.mxu0 0
        %778 = vmatpush1.bf16.msra.mxu0 %v757
        %779 = vmatprep.subr.bf16.mxu0 0
        %780 = vmatpush1.bf16.msra.mxu0 %v758
        %781 = vmatprep.subr.bf16.mxu0 0
        %782 = vmatpush1.bf16.msra.mxu0 %v759
        %783 = vmatprep.subr.bf16.mxu0 0
        %784 = vmatpush1.bf16.msra.mxu0 %v760
        %785 = vmatprep.subr.bf16.mxu0 0
        %786 = vmatpush1.bf16.msra.mxu0 0
        %787 = vmatprep.subr.bf16.mxu0 0
        %788 = vmatpush1.bf16.msra.mxu0 0
        %789 = vmatprep.subr.bf16.mxu0 0
        %790 = vmatpush1.bf16.msra.mxu0 0
        %791 = vmatprep.subr.bf16.mxu0 0
        %792 = vmatpush1.bf16.msra.mxu0 0
        %793 = vmatprep.subr.bf16.mxu0 0
        %794 = vmatpush1.bf16.msra.mxu0 0
        %795 = vmatprep.subr.bf16.mxu0 0
        %796 = vmatpush1.bf16.msra.mxu0 0
        %797 = vmatprep.subr.bf16.mxu0 0
        %798 = vmatpush1.bf16.msra.mxu0 0
        %799 = vmatprep.subr.bf16.mxu0 0
        %800 = vmatpush1.bf16.msra.mxu0 0
        %801 = vmatprep.mubr.bf16.mxu0 0
        %802 = vmatmul.mubr.bf16.gmra.mrb[0].mxu0 %v703
        %v803 = vpop.f32.mrb[0].mxu0
        %v804 = vadd.f32 0.0, %v803
        %v805 = vpop.f32.mrb[0].mxu0
        %v806 = vpop.f32.mrb[0].mxu0
        %v807 = vpop.f32.mrb[0].mxu0
        %808 = vdwg.mxu0
        %v809 = vadd.f32 %v695, %v804
        %s810 = sadd.s32 %s479, 7
        %s811 = smul.addr %s810, 4
        %s812 = scalar_lea.vmem [#allocation2], %s811
        %v813 = vld [vmem:[%s812] sm:$0xf]
        %s814 = scalar_lea.vmem %s3, 192
        %v815 = vld [vmem:[%s814] sm:$0xf]
        %v816 = vld [vmem:[%s814 + $0x4] sm:$0xf]
        %v817 = vld [vmem:[%s814 + $0x8] sm:$0xf]
        %v818 = vld [vmem:[%s814 + $0xc] sm:$0xf]
        %v819 = vld [vmem:[%s814 + $0x10] sm:$0xf]
        %v820 = vld [vmem:[%s814 + $0x14] sm:$0xf]
        %v821 = vld [vmem:[%s814 + $0x18] sm:$0xf]
        %v822 = vld [vmem:[%s814 + $0x1c] sm:$0xf]
        %v823 = vld [vmem:[%s814 + $0x20] sm:$0xf]
        %v824 = vld [vmem:[%s814 + $0x24] sm:$0xf]
        %v825 = vld [vmem:[%s814 + $0x28] sm:$0xf]
        %v826 = vld [vmem:[%s814 + $0x2c] sm:$0xf]
        %v827 = vld [vmem:[%s814 + $0x30] sm:$0xf]
        %v828 = vld [vmem:[%s814 + $0x34] sm:$0xf]
        %v829 = vld [vmem:[%s814 + $0x38] sm:$0xf]
        %v830 = vld [vmem:[%s814 + $0x3c] sm:$0xf]
        %v847 = vunpack.c.l.b16 %v815
        %v848 = vunpack.c.l.b16 %v816
        %v849 = vunpack.c.l.b16 %v817
        %v850 = vunpack.c.l.b16 %v818
        %v851 = vunpack.c.l.b16 %v819
        %v852 = vunpack.c.l.b16 %v820
        %v853 = vunpack.c.l.b16 %v821
        %v854 = vunpack.c.l.b16 %v822
        %v855 = vunpack.c.l.b16 %v823
        %v856 = vunpack.c.l.b16 %v824
        %v857 = vunpack.c.l.b16 %v825
        %v858 = vunpack.c.l.b16 %v826
        %v859 = vunpack.c.l.b16 %v827
        %v860 = vunpack.c.l.b16 %v828
        %v861 = vunpack.c.l.b16 %v829
        %v862 = vunpack.c.l.b16 %v830
        %v863 = vpack.c.b16 %v848, %v847
        %v864 = vpack.c.b16 %v850, %v849
        %v865 = vpack.c.b16 %v852, %v851
        %v866 = vpack.c.b16 %v854, %v853
        %v867 = vpack.c.b16 %v856, %v855
        %v868 = vpack.c.b16 %v858, %v857
        %v869 = vpack.c.b16 %v860, %v859
        %v870 = vpack.c.b16 %v862, %v861
        %879 = vmatprep.subr.bf16.mxu0 0
        %880 = vmatpush1.bf16.msra.mxu0 %v863
        %881 = vmatprep.subr.bf16.mxu0 0
        %882 = vmatpush1.bf16.msra.mxu0 %v864
        %883 = vmatprep.subr.bf16.mxu0 0
        %884 = vmatpush1.bf16.msra.mxu0 %v865
        %885 = vmatprep.subr.bf16.mxu0 0
        %886 = vmatpush1.bf16.msra.mxu0 %v866
        %887 = vmatprep.subr.bf16.mxu0 0
        %888 = vmatpush1.bf16.msra.mxu0 %v867
        %889 = vmatprep.subr.bf16.mxu0 0
        %890 = vmatpush1.bf16.msra.mxu0 %v868
        %891 = vmatprep.subr.bf16.mxu0 0
        %892 = vmatpush1.bf16.msra.mxu0 %v869
        %893 = vmatprep.subr.bf16.mxu0 0
        %894 = vmatpush1.bf16.msra.mxu0 %v870
        %895 = vmatprep.subr.bf16.mxu0 0
        %896 = vmatpush1.bf16.msra.mxu0 0
        %897 = vmatprep.subr.bf16.mxu0 0
        %898 = vmatpush1.bf16.msra.mxu0 0
        %899 = vmatprep.subr.bf16.mxu0 0
        %900 = vmatpush1.bf16.msra.mxu0 0
        %901 = vmatprep.subr.bf16.mxu0 0
        %902 = vmatpush1.bf16.msra.mxu0 0
        %903 = vmatprep.subr.bf16.mxu0 0
        %904 = vmatpush1.bf16.msra.mxu0 0
        %905 = vmatprep.subr.bf16.mxu0 0
        %906 = vmatpush1.bf16.msra.mxu0 0
        %907 = vmatprep.subr.bf16.mxu0 0
        %908 = vmatpush1.bf16.msra.mxu0 0
        %909 = vmatprep.subr.bf16.mxu0 0
        %910 = vmatpush1.bf16.msra.mxu0 0
        %911 = vmatprep.mubr.bf16.mxu0 0
        %912 = vmatmul.mubr.bf16.gmra.mrb[0].mxu0 %v813
        %v913 = vpop.f32.mrb[0].mxu0
        %v914 = vadd.f32 0.0, %v913
        %v915 = vpop.f32.mrb[0].mxu0
        %v916 = vpop.f32.mrb[0].mxu0
        %v917 = vpop.f32.mrb[0].mxu0
        %918 = vdwg.mxu0
        %v919 = vadd.f32 %v809, %v914
        %s920 = sadd.s32 %s479, 8
        %s921 = smul.addr %s920, 4
        %s922 = scalar_lea.vmem [#allocation2], %s921
        %v923 = vld [vmem:[%s922] sm:$0xf]
        %s924 = scalar_lea.vmem %s3, 256
        %v925 = vld [vmem:[%s924] sm:$0xf]
        %v926 = vld [vmem:[%s924 + $0x4] sm:$0xf]
        %v927 = vld [vmem:[%s924 + $0x8] sm:$0xf]
        %v928 = vld [vmem:[%s924 + $0xc] sm:$0xf]
        %v929 = vld [vmem:[%s924 + $0x10] sm:$0xf]
        %v930 = vld [vmem:[%s924 + $0x14] sm:$0xf]
        %v931 = vld [vmem:[%s924 + $0x18] sm:$0xf]
        %v932 = vld [vmem:[%s924 + $0x1c] sm:$0xf]
        %v933 = vld [vmem:[%s924 + $0x20] sm:$0xf]
        %v934 = vld [vmem:[%s924 + $0x24] sm:$0xf]
        %v935 = vld [vmem:[%s924 + $0x28] sm:$0xf]
        %v936 = vld [vmem:[%s924 + $0x2c] sm:$0xf]
        %v937 = vld [vmem:[%s924 + $0x30] sm:$0xf]
        %v938 = vld [vmem:[%s924 + $0x34] sm:$0xf]
        %v939 = vld [vmem:[%s924 + $0x38] sm:$0xf]
        %v940 = vld [vmem:[%s924 + $0x3c] sm:$0xf]
        %v957 = vunpack.c.l.b16 %v925
        %v958 = vunpack.c.l.b16 %v926
        %v959 = vunpack.c.l.b16 %v927
        %v960 = vunpack.c.l.b16 %v928
        %v961 = vunpack.c.l.b16 %v929
        %v962 = vunpack.c.l.b16 %v930
        %v963 = vunpack.c.l.b16 %v931
        %v964 = vunpack.c.l.b16 %v932
        %v965 = vunpack.c.l.b16 %v933
        %v966 = vunpack.c.l.b16 %v934
        %v967 = vunpack.c.l.b16 %v935
        %v968 = vunpack.c.l.b16 %v936
        %v969 = vunpack.c.l.b16 %v937
        %v970 = vunpack.c.l.b16 %v938
        %v971 = vunpack.c.l.b16 %v939
        %v972 = vunpack.c.l.b16 %v940
        %v973 = vpack.c.b16 %v958, %v957
        %v974 = vpack.c.b16 %v960, %v959
        %v975 = vpack.c.b16 %v962, %v961
        %v976 = vpack.c.b16 %v964, %v963
        %v977 = vpack.c.b16 %v966, %v965
        %v978 = vpack.c.b16 %v968, %v967
        %v979 = vpack.c.b16 %v970, %v969
        %v980 = vpack.c.b16 %v972, %v971
        %989 = vmatprep.subr.bf16.mxu0 0
        %990 = vmatpush1.bf16.msra.mxu0 %v973
        %991 = vmatprep.subr.bf16.mxu0 0
        %992 = vmatpush1.bf16.msra.mxu0 %v974
        %993 = vmatprep.subr.bf16.mxu0 0
        %994 = vmatpush1.bf16.msra.mxu0 %v975
        %995 = vmatprep.subr.bf16.mxu0 0
        %996 = vmatpush1.bf16.msra.mxu0 %v976
        %997 = vmatprep.subr.bf16.mxu0 0
        %998 = vmatpush1.bf16.msra.mxu0 %v977
        %999 = vmatprep.subr.bf16.mxu0 0
        %1000 = vmatpush1.bf16.msra.mxu0 %v978
        %1001 = vmatprep.subr.bf16.mxu0 0
        %1002 = vmatpush1.bf16.msra.mxu0 %v979
        %1003 = vmatprep.subr.bf16.mxu0 0
        %1004 = vmatpush1.bf16.msra.mxu0 %v980
        %1005 = vmatprep.subr.bf16.mxu0 0
        %1006 = vmatpush1.bf16.msra.mxu0 0
        %1007 = vmatprep.subr.bf16.mxu0 0
        %1008 = vmatpush1.bf16.msra.mxu0 0
        %1009 = vmatprep.subr.bf16.mxu0 0
        %1010 = vmatpush1.bf16.msra.mxu0 0
        %1011 = vmatprep.subr.bf16.mxu0 0
        %1012 = vmatpush1.bf16.msra.mxu0 0
        %1013 = vmatprep.subr.bf16.mxu0 0
        %1014 = vmatpush1.bf16.msra.mxu0 0
        %1015 = vmatprep.subr.bf16.mxu0 0
        %1016 = vmatpush1.bf16.msra.mxu0 0
        %1017 = vmatprep.subr.bf16.mxu0 0
        %1018 = vmatpush1.bf16.msra.mxu0 0
        %1019 = vmatprep.subr.bf16.mxu0 0
        %1020 = vmatpush1.bf16.msra.mxu0 0
        %1021 = vmatprep.mubr.bf16.mxu0 0
        %1022 = vmatmul.mubr.bf16.gmra.mrb[0].mxu0 %v923
        %v1023 = vpop.f32.mrb[0].mxu0
        %v1024 = vadd.f32 0.0, %v1023
        %v1025 = vpop.f32.mrb[0].mxu0
        %v1026 = vpop.f32.mrb[0].mxu0
        %v1027 = vpop.f32.mrb[0].mxu0
        %1028 = vdwg.mxu0
        %v1029 = vadd.f32 %v919, %v1024
        %s1030 = sadd.s32 %s479, 9
        %s1031 = smul.addr %s1030, 4
        %s1032 = scalar_lea.vmem [#allocation2], %s1031
        %v1033 = vld [vmem:[%s1032] sm:$0xf]
        %s1034 = scalar_lea.vmem %s3, 320
        %v1035 = vld [vmem:[%s1034] sm:$0xf]
        %v1036 = vld [vmem:[%s1034 + $0x4] sm:$0xf]
        %v1037 = vld [vmem:[%s1034 + $0x8] sm:$0xf]
        %v1038 = vld [vmem:[%s1034 + $0xc] sm:$0xf]
        %v1039 = vld [vmem:[%s1034 + $0x10] sm:$0xf]
        %v1040 = vld [vmem:[%s1034 + $0x14] sm:$0xf]
        %v1041 = vld [vmem:[%s1034 + $0x18] sm:$0xf]
        %v1042 = vld [vmem:[%s1034 + $0x1c] sm:$0xf]
        %v1043 = vld [vmem:[%s1034 + $0x20] sm:$0xf]
        %v1044 = vld [vmem:[%s1034 + $0x24] sm:$0xf]
        %v1045 = vld [vmem:[%s1034 + $0x28] sm:$0xf]
        %v1046 = vld [vmem:[%s1034 + $0x2c] sm:$0xf]
        %v1047 = vld [vmem:[%s1034 + $0x30] sm:$0xf]
        %v1048 = vld [vmem:[%s1034 + $0x34] sm:$0xf]
        %v1049 = vld [vmem:[%s1034 + $0x38] sm:$0xf]
        %v1050 = vld [vmem:[%s1034 + $0x3c] sm:$0xf]
        %v1067 = vunpack.c.l.b16 %v1035
        %v1068 = vunpack.c.l.b16 %v1036
        %v1069 = vunpack.c.l.b16 %v1037
        %v1070 = vunpack.c.l.b16 %v1038
        %v1071 = vunpack.c.l.b16 %v1039
        %v1072 = vunpack.c.l.b16 %v1040
        %v1073 = vunpack.c.l.b16 %v1041
        %v1074 = vunpack.c.l.b16 %v1042
        %v1075 = vunpack.c.l.b16 %v1043
        %v1076 = vunpack.c.l.b16 %v1044
        %v1077 = vunpack.c.l.b16 %v1045
        %v1078 = vunpack.c.l.b16 %v1046
        %v1079 = vunpack.c.l.b16 %v1047
        %v1080 = vunpack.c.l.b16 %v1048
        %v1081 = vunpack.c.l.b16 %v1049
        %v1082 = vunpack.c.l.b16 %v1050
        %v1083 = vpack.c.b16 %v1068, %v1067
        %v1084 = vpack.c.b16 %v1070, %v1069
        %v1085 = vpack.c.b16 %v1072, %v1071
        %v1086 = vpack.c.b16 %v1074, %v1073
        %v1087 = vpack.c.b16 %v1076, %v1075
        %v1088 = vpack.c.b16 %v1078, %v1077
        %v1089 = vpack.c.b16 %v1080, %v1079
        %v1090 = vpack.c.b16 %v1082, %v1081
        %1099 = vmatprep.subr.bf16.mxu0 0
        %1100 = vmatpush1.bf16.msra.mxu0 %v1083
        %1101 = vmatprep.subr.bf16.mxu0 0
        %1102 = vmatpush1.bf16.msra.mxu0 %v1084
        %1103 = vmatprep.subr.bf16.mxu0 0
        %1104 = vmatpush1.bf16.msra.mxu0 %v1085
        %1105 = vmatprep.subr.bf16.mxu0 0
        %1106 = vmatpush1.bf16.msra.mxu0 %v1086
        %1107 = vmatprep.subr.bf16.mxu0 0
        %1108 = vmatpush1.bf16.msra.mxu0 %v1087
        %1109 = vmatprep.subr.bf16.mxu0 0
        %1110 = vmatpush1.bf16.msra.mxu0 %v1088
        %1111 = vmatprep.subr.bf16.mxu0 0
        %1112 = vmatpush1.bf16.msra.mxu0 %v1089
        %1113 = vmatprep.subr.bf16.mxu0 0
        %1114 = vmatpush1.bf16.msra.mxu0 %v1090
        %1115 = vmatprep.subr.bf16.mxu0 0
        %1116 = vmatpush1.bf16.msra.mxu0 0
        %1117 = vmatprep.subr.bf16.mxu0 0
        %1118 = vmatpush1.bf16.msra.mxu0 0
        %1119 = vmatprep.subr.bf16.mxu0 0
        %1120 = vmatpush1.bf16.msra.mxu0 0
        %1121 = vmatprep.subr.bf16.mxu0 0
        %1122 = vmatpush1.bf16.msra.mxu0 0
        %1123 = vmatprep.subr.bf16.mxu0 0
        %1124 = vmatpush1.bf16.msra.mxu0 0
        %1125 = vmatprep.subr.bf16.mxu0 0
        %1126 = vmatpush1.bf16.msra.mxu0 0
        %1127 = vmatprep.subr.bf16.mxu0 0
        %1128 = vmatpush1.bf16.msra.mxu0 0
        %1129 = vmatprep.subr.bf16.mxu0 0
        %1130 = vmatpush1.bf16.msra.mxu0 0
        %1131 = vmatprep.mubr.bf16.mxu0 0
        %1132 = vmatmul.mubr.bf16.gmra.mrb[0].mxu0 %v1033
        %v1133 = vpop.f32.mrb[0].mxu0
        %v1134 = vadd.f32 0.0, %v1133
        %v1135 = vpop.f32.mrb[0].mxu0
        %v1136 = vpop.f32.mrb[0].mxu0
        %v1137 = vpop.f32.mrb[0].mxu0
        %1138 = vdwg.mxu0
        %v1139 = vadd.f32 %v1029, %v1134
        %s1140 = sadd.s32 %s479, 14
        %s1141 = smul.addr %s1140, 4
        %s1142 = scalar_lea.vmem [#allocation2], %s1141
        %v1143 = vld [vmem:[%s1142] sm:$0xf]
        %s1144 = scalar_lea.vmem %s3, 384
        %v1145 = vld [vmem:[%s1144] sm:$0xf]
        %v1146 = vld [vmem:[%s1144 + $0x4] sm:$0xf]
        %v1147 = vld [vmem:[%s1144 + $0x8] sm:$0xf]
        %v1148 = vld [vmem:[%s1144 + $0xc] sm:$0xf]
        %v1149 = vld [vmem:[%s1144 + $0x10] sm:$0xf]
        %v1150 = vld [vmem:[%s1144 + $0x14] sm:$0xf]
        %v1151 = vld [vmem:[%s1144 + $0x18] sm:$0xf]
        %v1152 = vld [vmem:[%s1144 + $0x1c] sm:$0xf]
        %v1153 = vld [vmem:[%s1144 + $0x20] sm:$0xf]
        %v1154 = vld [vmem:[%s1144 + $0x24] sm:$0xf]
        %v1155 = vld [vmem:[%s1144 + $0x28] sm:$0xf]
        %v1156 = vld [vmem:[%s1144 + $0x2c] sm:$0xf]
        %v1157 = vld [vmem:[%s1144 + $0x30] sm:$0xf]
        %v1158 = vld [vmem:[%s1144 + $0x34] sm:$0xf]
        %v1159 = vld [vmem:[%s1144 + $0x38] sm:$0xf]
        %v1160 = vld [vmem:[%s1144 + $0x3c] sm:$0xf]
        %v1177 = vunpack.c.l.b16 %v1145
        %v1178 = vunpack.c.l.b16 %v1146
        %v1179 = vunpack.c.l.b16 %v1147
        %v1180 = vunpack.c.l.b16 %v1148
        %v1181 = vunpack.c.l.b16 %v1149
        %v1182 = vunpack.c.l.b16 %v1150
        %v1183 = vunpack.c.l.b16 %v1151
        %v1184 = vunpack.c.l.b16 %v1152
        %v1185 = vunpack.c.l.b16 %v1153
        %v1186 = vunpack.c.l.b16 %v1154
        %v1187 = vunpack.c.l.b16 %v1155
        %v1188 = vunpack.c.l.b16 %v1156
        %v1189 = vunpack.c.l.b16 %v1157
        %v1190 = vunpack.c.l.b16 %v1158
        %v1191 = vunpack.c.l.b16 %v1159
        %v1192 = vunpack.c.l.b16 %v1160
        %v1193 = vpack.c.b16 %v1178, %v1177
        %v1194 = vpack.c.b16 %v1180, %v1179
        %v1195 = vpack.c.b16 %v1182, %v1181
        %v1196 = vpack.c.b16 %v1184, %v1183
        %v1197 = vpack.c.b16 %v1186, %v1185
        %v1198 = vpack.c.b16 %v1188, %v1187
        %v1199 = vpack.c.b16 %v1190, %v1189
        %v1200 = vpack.c.b16 %v1192, %v1191
        %1209 = vmatprep.subr.bf16.mxu0 0
        %1210 = vmatpush1.bf16.msra.mxu0 %v1193
        %1211 = vmatprep.subr.bf16.mxu0 0
        %1212 = vmatpush1.bf16.msra.mxu0 %v1194
        %1213 = vmatprep.subr.bf16.mxu0 0
        %1214 = vmatpush1.bf16.msra.mxu0 %v1195
        %1215 = vmatprep.subr.bf16.mxu0 0
        %1216 = vmatpush1.bf16.msra.mxu0 %v1196
        %1217 = vmatprep.subr.bf16.mxu0 0
        %1218 = vmatpush1.bf16.msra.mxu0 %v1197
        %1219 = vmatprep.subr.bf16.mxu0 0
        %1220 = vmatpush1.bf16.msra.mxu0 %v1198
        %1221 = vmatprep.subr.bf16.mxu0 0
        %1222 = vmatpush1.bf16.msra.mxu0 %v1199
        %1223 = vmatprep.subr.bf16.mxu0 0
        %1224 = vmatpush1.bf16.msra.mxu0 %v1200
        %1225 = vmatprep.subr.bf16.mxu0 0
        %1226 = vmatpush1.bf16.msra.mxu0 0
        %1227 = vmatprep.subr.bf16.mxu0 0
        %1228 = vmatpush1.bf16.msra.mxu0 0
        %1229 = vmatprep.subr.bf16.mxu0 0
        %1230 = vmatpush1.bf16.msra.mxu0 0
        %1231 = vmatprep.subr.bf16.mxu0 0
        %1232 = vmatpush1.bf16.msra.mxu0 0
        %1233 = vmatprep.subr.bf16.mxu0 0
        %1234 = vmatpush1.bf16.msra.mxu0 0
        %1235 = vmatprep.subr.bf16.mxu0 0
        %1236 = vmatpush1.bf16.msra.mxu0 0
        %1237 = vmatprep.subr.bf16.mxu0 0
        %1238 = vmatpush1.bf16.msra.mxu0 0
        %1239 = vmatprep.subr.bf16.mxu0 0
        %1240 = vmatpush1.bf16.msra.mxu0 0
        %1241 = vmatprep.mubr.bf16.mxu0 0
        %1242 = vmatmul.mubr.bf16.gmra.mrb[0].mxu0 %v1143
        %v1243 = vpop.f32.mrb[0].mxu0
        %v1244 = vadd.f32 0.0, %v1243
        %v1245 = vpop.f32.mrb[0].mxu0
        %v1246 = vpop.f32.mrb[0].mxu0
        %v1247 = vpop.f32.mrb[0].mxu0
        %1248 = vdwg.mxu0
        %v1249 = vadd.f32 %v1139, %v1244
        %s1250 = sadd.s32 %s479, 15
        %s1251 = smul.addr %s1250, 4
        %s1252 = scalar_lea.vmem [#allocation2], %s1251
        %v1253 = vld [vmem:[%s1252] sm:$0xf]
        %s1254 = scalar_lea.vmem %s3, 448
        %v1255 = vld [vmem:[%s1254] sm:$0xf]
        %v1256 = vld [vmem:[%s1254 + $0x4] sm:$0xf]
        %v1257 = vld [vmem:[%s1254 + $0x8] sm:$0xf]
        %v1258 = vld [vmem:[%s1254 + $0xc] sm:$0xf]
        %v1259 = vld [vmem:[%s1254 + $0x10] sm:$0xf]
        %v1260 = vld [vmem:[%s1254 + $0x14] sm:$0xf]
        %v1261 = vld [vmem:[%s1254 + $0x18] sm:$0xf]
        %v1262 = vld [vmem:[%s1254 + $0x1c] sm:$0xf]
        %v1263 = vld [vmem:[%s1254 + $0x20] sm:$0xf]
        %v1264 = vld [vmem:[%s1254 + $0x24] sm:$0xf]
        %v1265 = vld [vmem:[%s1254 + $0x28] sm:$0xf]
        %v1266 = vld [vmem:[%s1254 + $0x2c] sm:$0xf]
        %v1267 = vld [vmem:[%s1254 + $0x30] sm:$0xf]
        %v1268 = vld [vmem:[%s1254 + $0x34] sm:$0xf]
        %v1269 = vld [vmem:[%s1254 + $0x38] sm:$0xf]
        %v1270 = vld [vmem:[%s1254 + $0x3c] sm:$0xf]
        %v1287 = vunpack.c.l.b16 %v1255
        %v1288 = vunpack.c.l.b16 %v1256
        %v1289 = vunpack.c.l.b16 %v1257
        %v1290 = vunpack.c.l.b16 %v1258
        %v1291 = vunpack.c.l.b16 %v1259
        %v1292 = vunpack.c.l.b16 %v1260
        %v1293 = vunpack.c.l.b16 %v1261
        %v1294 = vunpack.c.l.b16 %v1262
        %v1295 = vunpack.c.l.b16 %v1263
        %v1296 = vunpack.c.l.b16 %v1264
        %v1297 = vunpack.c.l.b16 %v1265
        %v1298 = vunpack.c.l.b16 %v1266
        %v1299 = vunpack.c.l.b16 %v1267
        %v1300 = vunpack.c.l.b16 %v1268
        %v1301 = vunpack.c.l.b16 %v1269
        %v1302 = vunpack.c.l.b16 %v1270
        %v1303 = vpack.c.b16 %v1288, %v1287
        %v1304 = vpack.c.b16 %v1290, %v1289
        %v1305 = vpack.c.b16 %v1292, %v1291
        %v1306 = vpack.c.b16 %v1294, %v1293
        %v1307 = vpack.c.b16 %v1296, %v1295
        %v1308 = vpack.c.b16 %v1298, %v1297
        %v1309 = vpack.c.b16 %v1300, %v1299
        %v1310 = vpack.c.b16 %v1302, %v1301
        %1319 = vmatprep.subr.bf16.mxu0 0
        %1320 = vmatpush1.bf16.msra.mxu0 %v1303
        %1321 = vmatprep.subr.bf16.mxu0 0
        %1322 = vmatpush1.bf16.msra.mxu0 %v1304
        %1323 = vmatprep.subr.bf16.mxu0 0
        %1324 = vmatpush1.bf16.msra.mxu0 %v1305
        %1325 = vmatprep.subr.bf16.mxu0 0
        %1326 = vmatpush1.bf16.msra.mxu0 %v1306
        %1327 = vmatprep.subr.bf16.mxu0 0
        %1328 = vmatpush1.bf16.msra.mxu0 %v1307
        %1329 = vmatprep.subr.bf16.mxu0 0
        %1330 = vmatpush1.bf16.msra.mxu0 %v1308
        %1331 = vmatprep.subr.bf16.mxu0 0
        %1332 = vmatpush1.bf16.msra.mxu0 %v1309
        %1333 = vmatprep.subr.bf16.mxu0 0
        %1334 = vmatpush1.bf16.msra.mxu0 %v1310
        %1335 = vmatprep.subr.bf16.mxu0 0
        %1336 = vmatpush1.bf16.msra.mxu0 0
        %1337 = vmatprep.subr.bf16.mxu0 0
        %1338 = vmatpush1.bf16.msra.mxu0 0
        %1339 = vmatprep.subr.bf16.mxu0 0
        %1340 = vmatpush1.bf16.msra.mxu0 0
        %1341 = vmatprep.subr.bf16.mxu0 0
        %1342 = vmatpush1.bf16.msra.mxu0 0
        %1343 = vmatprep.subr.bf16.mxu0 0
        %1344 = vmatpush1.bf16.msra.mxu0 0
        %1345 = vmatprep.subr.bf16.mxu0 0
        %1346 = vmatpush1.bf16.msra.mxu0 0
        %1347 = vmatprep.subr.bf16.mxu0 0
        %1348 = vmatpush1.bf16.msra.mxu0 0
        %1349 = vmatprep.subr.bf16.mxu0 0
        %1350 = vmatpush1.bf16.msra.mxu0 0
        %1351 = vmatprep.mubr.bf16.mxu0 0
        %1352 = vmatmul.mubr.bf16.gmra.mrb[0].mxu0 %v1253
        %v1353 = vpop.f32.mrb[0].mxu0
        %v1354 = vadd.f32 0.0, %v1353
        %v1355 = vpop.f32.mrb[0].mxu0
        %v1356 = vpop.f32.mrb[0].mxu0
        %v1357 = vpop.f32.mrb[0].mxu0
        %1358 = vdwg.mxu0
        %v1359 = vadd.f32 %v1249, %v1354
        %s1360 = sadd.s32 %s479, 16
        %s1361 = smul.addr %s1360, 4
        %s1362 = scalar_lea.vmem [#allocation2], %s1361
        %v1363 = vld [vmem:[%s1362] sm:$0xf]
        %s1364 = scalar_lea.vmem %s3, 512
        %v1365 = vld [vmem:[%s1364] sm:$0xf]
        %v1366 = vld [vmem:[%s1364 + $0x4] sm:$0xf]
        %v1367 = vld [vmem:[%s1364 + $0x8] sm:$0xf]
        %v1368 = vld [vmem:[%s1364 + $0xc] sm:$0xf]
        %v1369 = vld [vmem:[%s1364 + $0x10] sm:$0xf]
        %v1370 = vld [vmem:[%s1364 + $0x14] sm:$0xf]
        %v1371 = vld [vmem:[%s1364 + $0x18] sm:$0xf]
        %v1372 = vld [vmem:[%s1364 + $0x1c] sm:$0xf]
        %v1373 = vld [vmem:[%s1364 + $0x20] sm:$0xf]
        %v1374 = vld [vmem:[%s1364 + $0x24] sm:$0xf]
        %v1375 = vld [vmem:[%s1364 + $0x28] sm:$0xf]
        %v1376 = vld [vmem:[%s1364 + $0x2c] sm:$0xf]
        %v1377 = vld [vmem:[%s1364 + $0x30] sm:$0xf]
        %v1378 = vld [vmem:[%s1364 + $0x34] sm:$0xf]
        %v1379 = vld [vmem:[%s1364 + $0x38] sm:$0xf]
        %v1380 = vld [vmem:[%s1364 + $0x3c] sm:$0xf]
        %v1397 = vunpack.c.l.b16 %v1365
        %v1398 = vunpack.c.l.b16 %v1366
        %v1399 = vunpack.c.l.b16 %v1367
        %v1400 = vunpack.c.l.b16 %v1368
        %v1401 = vunpack.c.l.b16 %v1369
        %v1402 = vunpack.c.l.b16 %v1370
        %v1403 = vunpack.c.l.b16 %v1371
        %v1404 = vunpack.c.l.b16 %v1372
        %v1405 = vunpack.c.l.b16 %v1373
        %v1406 = vunpack.c.l.b16 %v1374
        %v1407 = vunpack.c.l.b16 %v1375
        %v1408 = vunpack.c.l.b16 %v1376
        %v1409 = vunpack.c.l.b16 %v1377
        %v1410 = vunpack.c.l.b16 %v1378
        %v1411 = vunpack.c.l.b16 %v1379
        %v1412 = vunpack.c.l.b16 %v1380
        %v1413 = vpack.c.b16 %v1398, %v1397
        %v1414 = vpack.c.b16 %v1400, %v1399
        %v1415 = vpack.c.b16 %v1402, %v1401
        %v1416 = vpack.c.b16 %v1404, %v1403
        %v1417 = vpack.c.b16 %v1406, %v1405
        %v1418 = vpack.c.b16 %v1408, %v1407
        %v1419 = vpack.c.b16 %v1410, %v1409
        %v1420 = vpack.c.b16 %v1412, %v1411
        %1429 = vmatprep.subr.bf16.mxu0 0
        %1430 = vmatpush1.bf16.msra.mxu0 %v1413
        %1431 = vmatprep.subr.bf16.mxu0 0
        %1432 = vmatpush1.bf16.msra.mxu0 %v1414
        %1433 = vmatprep.subr.bf16.mxu0 0
        %1434 = vmatpush1.bf16.msra.mxu0 %v1415
        %1435 = vmatprep.subr.bf16.mxu0 0
        %1436 = vmatpush1.bf16.msra.mxu0 %v1416
        %1437 = vmatprep.subr.bf16.mxu0 0
        %1438 = vmatpush1.bf16.msra.mxu0 %v1417
        %1439 = vmatprep.subr.bf16.mxu0 0
        %1440 = vmatpush1.bf16.msra.mxu0 %v1418
        %1441 = vmatprep.subr.bf16.mxu0 0
        %1442 = vmatpush1.bf16.msra.mxu0 %v1419
        %1443 = vmatprep.subr.bf16.mxu0 0
        %1444 = vmatpush1.bf16.msra.mxu0 %v1420
        %1445 = vmatprep.subr.bf16.mxu0 0
        %1446 = vmatpush1.bf16.msra.mxu0 0
        %1447 = vmatprep.subr.bf16.mxu0 0
        %1448 = vmatpush1.bf16.msra.mxu0 0
        %1449 = vmatprep.subr.bf16.mxu0 0
        %1450 = vmatpush1.bf16.msra.mxu0 0
        %1451 = vmatprep.subr.bf16.mxu0 0
        %1452 = vmatpush1.bf16.msra.mxu0 0
        %1453 = vmatprep.subr.bf16.mxu0 0
        %1454 = vmatpush1.bf16.msra.mxu0 0
        %1455 = vmatprep.subr.bf16.mxu0 0
        %1456 = vmatpush1.bf16.msra.mxu0 0
        %1457 = vmatprep.subr.bf16.mxu0 0
        %1458 = vmatpush1.bf16.msra.mxu0 0
        %1459 = vmatprep.subr.bf16.mxu0 0
        %1460 = vmatpush1.bf16.msra.mxu0 0
        %1461 = vmatprep.mubr.bf16.mxu0 0
        %1462 = vmatmul.mubr.bf16.gmra.mrb[0].mxu0 %v1363
        %v1463 = vpop.f32.mrb[0].mxu0
        %v1464 = vadd.f32 0.0, %v1463
        %v1465 = vpop.f32.mrb[0].mxu0
        %v1466 = vpop.f32.mrb[0].mxu0
        %v1467 = vpop.f32.mrb[0].mxu0
        %1468 = vdwg.mxu0
        %v1469 = vadd.f32 %v1359, %v1464
        %v1470 = vadd.f32 %v1469, %v476
        %v1471 = vmax.f32 %v1470, 0.0
        %v1472 = vpack.c.bf16 %v1471, %v1471
        %v1473 = vld [vmem:[#allocation3] sm:$0xff]
        %s1474 = smul.u32 %s479, 16
        %s1475 = smul.addr %s1474, 4
        %s1476 = scalar_lea.vmem %s5, %s1475
        %v1477 = vld [vmem:[%s1476] sm:$0xf]
        %v1478 = vld [vmem:[%s1476 + $0x4] sm:$0xf]
        %v1479 = vld [vmem:[%s1476 + $0x8] sm:$0xf]
        %v1480 = vld [vmem:[%s1476 + $0xc] sm:$0xf]
        %v1481 = vld [vmem:[%s1476 + $0x10] sm:$0xf]
        %v1482 = vld [vmem:[%s1476 + $0x14] sm:$0xf]
        %v1483 = vld [vmem:[%s1476 + $0x18] sm:$0xf]
        %v1484 = vld [vmem:[%s1476 + $0x1c] sm:$0xf]
        %v1485 = vld [vmem:[%s1476 + $0x20] sm:$0xf]
        %v1486 = vld [vmem:[%s1476 + $0x24] sm:$0xf]
        %v1487 = vld [vmem:[%s1476 + $0x28] sm:$0xf]
        %v1488 = vld [vmem:[%s1476 + $0x2c] sm:$0xf]
        %v1489 = vld [vmem:[%s1476 + $0x30] sm:$0xf]
        %v1490 = vld [vmem:[%s1476 + $0x34] sm:$0xf]
        %v1491 = vld [vmem:[%s1476 + $0x38] sm:$0xf]
        %v1492 = vld [vmem:[%s1476 + $0x3c] sm:$0xf]
        %v1509 = vunpack.c.l.b16 %v1477
        %v1510 = vunpack.c.l.b16 %v1478
        %v1511 = vunpack.c.l.b16 %v1479
        %v1512 = vunpack.c.l.b16 %v1480
        %v1513 = vunpack.c.l.b16 %v1481
        %v1514 = vunpack.c.l.b16 %v1482
        %v1515 = vunpack.c.l.b16 %v1483
        %v1516 = vunpack.c.l.b16 %v1484
        %v1517 = vunpack.c.l.b16 %v1485
        %v1518 = vunpack.c.l.b16 %v1486
        %v1519 = vunpack.c.l.b16 %v1487
        %v1520 = vunpack.c.l.b16 %v1488
        %v1521 = vunpack.c.l.b16 %v1489
        %v1522 = vunpack.c.l.b16 %v1490
        %v1523 = vunpack.c.l.b16 %v1491
        %v1524 = vunpack.c.l.b16 %v1492
        %v1525 = vpack.c.b16 %v1510, %v1509
        %v1526 = vpack.c.b16 %v1512, %v1511
        %v1527 = vpack.c.b16 %v1514, %v1513
        %v1528 = vpack.c.b16 %v1516, %v1515
        %v1529 = vpack.c.b16 %v1518, %v1517
        %v1530 = vpack.c.b16 %v1520, %v1519
        %v1531 = vpack.c.b16 %v1522, %v1521
        %v1532 = vpack.c.b16 %v1524, %v1523
        %1541 = vmatprep.subr.bf16.mxu0 0
        %1542 = vmatpush1.bf16.msra.mxu0 %v1525
        %1543 = vmatprep.subr.bf16.mxu0 0
        %1544 = vmatpush1.bf16.msra.mxu0 %v1526
        %1545 = vmatprep.subr.bf16.mxu0 0
        %1546 = vmatpush1.bf16.msra.mxu0 %v1527
        %1547 = vmatprep.subr.bf16.mxu0 0
        %1548 = vmatpush1.bf16.msra.mxu0 %v1528
        %1549 = vmatprep.subr.bf16.mxu0 0
        %1550 = vmatpush1.bf16.msra.mxu0 %v1529
        %1551 = vmatprep.subr.bf16.mxu0 0
        %1552 = vmatpush1.bf16.msra.mxu0 %v1530
        %1553 = vmatprep.subr.bf16.mxu0 0
        %1554 = vmatpush1.bf16.msra.mxu0 %v1531
        %1555 = vmatprep.subr.bf16.mxu0 0
        %1556 = vmatpush1.bf16.msra.mxu0 %v1532
        %1557 = vmatprep.subr.bf16.mxu0 0
        %1558 = vmatpush1.bf16.msra.mxu0 0
        %1559 = vmatprep.subr.bf16.mxu0 0
        %1560 = vmatpush1.bf16.msra.mxu0 0
        %1561 = vmatprep.subr.bf16.mxu0 0
        %1562 = vmatpush1.bf16.msra.mxu0 0
        %1563 = vmatprep.subr.bf16.mxu0 0
        %1564 = vmatpush1.bf16.msra.mxu0 0
        %1565 = vmatprep.subr.bf16.mxu0 0
        %1566 = vmatpush1.bf16.msra.mxu0 0
        %1567 = vmatprep.subr.bf16.mxu0 0
        %1568 = vmatpush1.bf16.msra.mxu0 0
        %1569 = vmatprep.subr.bf16.mxu0 0
        %1570 = vmatpush1.bf16.msra.mxu0 0
        %1571 = vmatprep.subr.bf16.mxu0 0
        %1572 = vmatpush1.bf16.msra.mxu0 0
        %1573 = vmatprep.mubr.bf16.mxu0 0
        %1574 = vmatmul.mubr.bf16.gmra.mrb[0].mxu0 %v1472
        %v1575 = vpop.f32.mrb[0].mxu0
        %v1576 = vadd.f32 0.0, %v1575
        %v1577 = vpop.f32.mrb[0].mxu0
        %v1578 = vpop.f32.mrb[0].mxu0
        %v1579 = vpop.f32.mrb[0].mxu0
        %1580 = vdwg.mxu0
        %v1581 = vadd.f32 %v1473, %v1576
        %1582 = vst [vmem:[#allocation3] sm:$0xff] %v1581
      $region64: #{conv2d_subsampling2_forward.1} parent=51 // loop_footer
        %s483 = sadd.s32 1, %s479
      $region65: #{conv2d_subsampling2_forward.1} parent=51 // loop_footer_branch
        %478 = sbr.rel target = $region61
      $region66: #{conv2d_subsampling2_forward.1} parent=51 // loop_exit
        _
      %v1583 = vld [vmem:[#allocation3] sm:$0xff]
      %v1584 = vld [vmem:[%s6] sm:$0x1]
      %v1586 = vlaneseq
      %v1587 = vshrl.u32 %v1586, 7
      %v1588 = vsub.s32 0, %v1587
      %v1589 = vrot.slane %v1584, %v1588
      %v1591 = vadd.f32 %v1583, %v1589
      %v1592 = vmul.f32 %v1591, 5.656854
      %v1593 = vld [vmem:[%s340] sm:$0xff]
      %v1594 = vadd.f32 %v1592, %v1593
      %1595 = vst [vmem:[%s347] sm:$0xff] %v1594
      %p1596 = scmp.lt.s32.totalorder %s23, 1
      %s1597 = scalar_select %p1596, %s23, 1
      %p1598 = scmp.lt.s32.totalorder %s24, 0
      %s1599 = scalar_select %p1598, %s24, 0
      %s1600 = sadd.s32 %s1599, %s1597
      %s1601 = smul.addr %s1600, 8
      %s1602 = scalar_lea.vmem %s8, %s1601
      // Predicated region
      $region67: #{conv2d_subsampling2_forward.1} parent=51 // pred_check
        %p1603 = pneg %p231
      $region68: #{conv2d_subsampling2_forward.1} parent=51 // pred_check_branch
        %1605 = sbr.rel (%p1603) target = $region70
      $region69: #{conv2d_subsampling2_forward.1} parent=51 // pred_region
        _
      $region70: #{conv2d_subsampling2_forward.1} parent=51 // pred_fallthru
        _
    $region52: #{conv2d_subsampling2_forward.1} parent=5 // pred_fallthru
      _
    %p1606 = scmp.le.s32.totalorder 2, %s14
    // Predicated region
    $region71: #{conv2d_subsampling2_forward.1} parent=5 // pred_check
      %p1607 = pneg %p1606
    $region72: #{conv2d_subsampling2_forward.1} parent=5 // pred_check_branch
      %1609 = sbr.rel (%p1607) target = $region74
    $region73: #{conv2d_subsampling2_forward.1} parent=5 // pred_region
      %s1610 = ssub.s32 %s14, 2
      // Predicated region
      $region75: #{conv2d_subsampling2_forward.1} parent=73 // pred_check
        %p1611 = pneg %p237
      $region76: #{conv2d_subsampling2_forward.1} parent=73 // pred_check_branch
        %1613 = sbr.rel (%p1611) target = $region78
      $region77: #{conv2d_subsampling2_forward.1} parent=73 // pred_region
        %p1614 = scmp.lt.s32.totalorder %s25, 1
        %s1615 = scalar_select %p1614, %s25, 1
        %p1616 = scmp.lt.s32.totalorder %s26, 0
        %s1617 = scalar_select %p1616, %s26, 0
        %s1618 = sadd.s32 %s1617, %s1615
        %s1619 = smul.addr %s1618, 8
        %s1620 = scalar_lea.vmem %s8, %s1619
      $region78: #{conv2d_subsampling2_forward.1} parent=73 // pred_fallthru
        _
    $region74: #{conv2d_subsampling2_forward.1} parent=5 // pred_fallthru
      _
  $region6: #{conv2d_subsampling2_forward.1} parent=0 // loop_footer
    %s18 = sadd.s32 1, %s14
  $region7: #{conv2d_subsampling2_forward.1} parent=0 // loop_footer_branch
    %13 = sbr.rel target = $region3
  $region8: #{conv2d_subsampling2_forward.1} parent=0 // loop_exit
    _

</llo_original>
